<compile_context>
chip_gen: v7x
topology: tpu7x:2x2x1
jax: 0.10.0
libtpu: 0.0.40
codegen_flags: <defaults>
</compile_context>

<pallas_src>
import functools

import jax
import jax.numpy as jnp
from jax.experimental import pallas as pl
from jax.experimental.pallas import tpu as pltpu


# ----------------------------------------------------------------------------
# helpers
# ----------------------------------------------------------------------------
def _layernorm(x, w, b, eps=1e-5):
    mu = jnp.mean(x, axis=-1, keepdims=True)
    var = jnp.mean((x - mu) ** 2, axis=-1, keepdims=True)
    return (x - mu) * jax.lax.rsqrt(var + eps) * w + b


def _round_up(n, m):
    return ((n + m - 1) // m) * m


def _pick_row_group(batch, seq_len, max_rows=1024, min_steps=2):
    """Pick bsub = batch elements per grid step.

    * bsub divides batch
    * bsub*seq_len % 8 == 0 (sublane rule) unless bsub == batch (full array)
    * prefer >= min_steps grid steps (keeps both v7x TensorCores busy and
      enables input/output pipelining)
    * prefer the largest row group <= max_rows (amortizes ~0.35us/step).
    """
    valid = [d for d in range(1, batch + 1)
             if batch % d == 0 and ((d * seq_len) % 8 == 0 or d == batch)]
    pref = [d for d in valid if d * seq_len <= max_rows and batch // d >= min_steps]
    if pref:
        return max(pref)
    fit = [d for d in valid if d * seq_len <= max_rows]
    if fit:
        return max(fit)
    return min(valid)


def _pick_tile(dim, preferred, align):
    """Largest multiple of `align` dividing `dim`, <= preferred; else full dim."""
    best = None
    for d in range(align, min(dim, preferred) + 1, align):
        if dim % d == 0:
            best = d
    return best if best is not None else dim


@functools.lru_cache(maxsize=1)
def _vmem_limit_bytes():
    """~80% of physical VMEM (~102 MiB v5e/v6e, ~51 MiB v7x). Default scoped
    limits (16/32 MiB) are well below what resident-weight tiling needs."""
    try:
        return int(0.80 * pltpu.get_tpu_info().vmem_capacity_bytes)
    except Exception:
        return 48 * 1024 * 1024


def _buffered_spec(shape, index_map, nbuf):
    """BlockSpec with an explicit buffer count. Grid-invariant weights never
    re-fetch, so a single buffer suffices (halves weight VMEM residency)."""
    try:
        return pl.BlockSpec(shape, index_map, pipeline_mode=pl.Buffered(nbuf))
    except (TypeError, AttributeError):   # jax without BlockSpec.pipeline_mode
        return pl.BlockSpec(shape, index_map)


# ----------------------------------------------------------------------------
# Kernels
# ----------------------------------------------------------------------------
def transformer_block_kernel(
    x_ref, wqkv_ref, wo_ref, bo_ref,
    ln1w_ref, ln1b_ref, ln2w_ref, ln2b_ref,
    w1_ref, b1_ref, w2_ref, b2_ref,
    lnfw_ref, lnfb_ref,
    out_ref, *, n_heads, n_embd, seq_len, bsub, apply_final_ln,
):
    E, H, T = n_embd, n_heads, seq_len
    hs = E // H
    bf16, f32 = jnp.bfloat16, jnp.float32

    x = x_ref[...].astype(f32)                             # (rows, E) bf16->f32

    # ---- self-attention branch (pre-LN) ----
    xn = _layernorm(x, ln1w_ref[0], ln1b_ref[0])
    # fused QKV projection: one wide MXU matmul, bf16 inputs / f32 accumulation
    qkv = jnp.dot(xn.astype(bf16), wqkv_ref[...],
                  preferred_element_type=f32)              # (rows, 3E)

    scale = n_embd ** (-0.5)        # reference scales by C=n_embd, not head_size
    row_i = jax.lax.broadcasted_iota(jnp.int32, (T, T), 0)
    col_i = jax.lax.broadcasted_iota(jnp.int32, (T, T), 1)
    causal = (col_i <= row_i)[None, :, :]                  # (1, T, T)

    # Head-batched attention: heads become the single batch dim of the einsums
    # (no per-head tiny-K matmuls, no lane-offset head slices).
    # TODO(synk): flash-style K/V tiling + online softmax for realistic T
    # (the (H, T, T) f32 scores are fully VMEM-resident here).
    o_parts = []
    for b in range(bsub):                                  # static, bsub is small
        r0 = b * T
        qb = qkv[r0:r0 + T, 0 * E:1 * E].reshape(T, H, hs)
        kb = qkv[r0:r0 + T, 1 * E:2 * E].reshape(T, H, hs)
        vb = qkv[r0:r0 + T, 2 * E:3 * E].reshape(T, H, hs)
        qh = pltpu.einshape("thd->htd", qb)                # (H, T, hs)
        kh = pltpu.einshape("thd->htd", kb)
        vh = pltpu.einshape("thd->htd", vb)
        s = jnp.einsum("hqd,hkd->hqk", qh.astype(bf16), kh.astype(bf16),
                       preferred_element_type=f32) * scale  # (H, T, T)
        s = jnp.where(causal, s, -1e30)                    # finite mask (no -inf)
        m = jnp.max(s, axis=-1, keepdims=True)
        e = jnp.exp(s - m)
        denom = jnp.sum(e, axis=-1, keepdims=True)
        p = e * pl.reciprocal(denom, approx=True)          # EUP reciprocal
        oh = jnp.einsum("hqk,hkd->hqd", p.astype(bf16), vh.astype(bf16),
                        preferred_element_type=f32)        # (H, T, hs)
        o_parts.append(pltpu.einshape("htd->thd", oh).reshape(T, E))
    o = o_parts[0] if bsub == 1 else jnp.concatenate(o_parts, axis=0)

    # single full-K (E) output projection instead of H small K=hs matmuls
    sa = jnp.dot(o.astype(bf16), wo_ref[...], preferred_element_type=f32)
    x = x + sa + bo_ref[0]

    # ---- feed-forward branch (pre-LN) ----
    # TODO(synk): at realistic E, tile w1/w2 over the 4E hidden axis (extra
    # 'arbitrary' grid axis + f32 accumulator) so weights need not be fully
    # resident in v7x's 64 MiB VMEM.
    xn2 = _layernorm(x, ln2w_ref[0], ln2b_ref[0])
    h1 = jnp.dot(xn2.astype(bf16), w1_ref[...],
                 preferred_element_type=f32) + b1_ref[0]
    h1 = jnp.maximum(h1, 0.0)
    ff = jnp.dot(h1.astype(bf16), w2_ref[...],
                 preferred_element_type=f32) + b2_ref[0]
    y = x + ff

    if apply_final_ln:   # ln_f fused into the last block (saves an HBM round-trip)
        y = _layernorm(y, lnfw_ref[0], lnfb_ref[0])
    out_ref[...] = y.astype(out_ref.dtype)                 # bf16 back to HBM


def lm_head_kernel(x_ref, w_ref, b_ref, o_ref):
    # x pre-cast to bf16 in the wrapper; f32 accumulation; f32 logits out.
    o_ref[...] = (jnp.dot(x_ref[...], w_ref[...],
                          preferred_element_type=jnp.float32) + b_ref[0])


# ----------------------------------------------------------------------------
# Wrappers
# ----------------------------------------------------------------------------
def run_transformer_block(x2d, p, lnf_w, lnf_b, *, n_heads, seq_len, bsub,
                          apply_final_ln):
    R, E = x2d.shape
    H4 = 4 * E
    rows = bsub * seq_len
    const = lambda shp: pl.BlockSpec(shp, lambda i: (0, 0))
    wspec = lambda shp: _buffered_spec(shp, lambda i: (0, 0), 1)  # single-buffer
    kernel = functools.partial(
        transformer_block_kernel, n_heads=n_heads, n_embd=E,
        seq_len=seq_len, bsub=bsub, apply_final_ln=apply_final_ln)
    return pl.pallas_call(
        kernel,
        out_shape=jax.ShapeDtypeStruct((R, E), jnp.bfloat16),   # bf16 activations
        grid=(R // rows,),
        in_specs=[
            pl.BlockSpec((rows, E), lambda i: (i, 0)),    # x row-group (bf16)
            wspec((E, 3 * E)),                            # fused Wqkv (bf16)
            wspec((E, E)), const((1, E)),                 # Wo (bf16), bo
            const((1, E)), const((1, E)),                 # ln1 w/b
            const((1, E)), const((1, E)),                 # ln2 w/b
            wspec((E, H4)), const((1, H4)),               # ffn W1 (bf16), b1
            wspec((H4, E)), const((1, E)),                # ffn W2 (bf16), b2
            const((1, E)), const((1, E)),                 # ln_f w/b
        ],
        out_specs=pl.BlockSpec((rows, E), lambda i: (i, 0)),
        compiler_params=pltpu.CompilerParams(
            dimension_semantics=("parallel",),
            vmem_limit_bytes=_vmem_limit_bytes()),
    )(x2d, p["wqkv"], p["wo"], p["bo"],
      p["ln1w"], p["ln1b"], p["ln2w"], p["ln2b"],
      p["w1"], p["b1"], p["w2"], p["b2"],
      lnf_w, lnf_b)


def run_lm_head(x2d_bf16, w, b):
    # TODO(synk): at realistic E on v7x, add a K-tile ('arbitrary' axis + f32
    # VMEM accumulator) over the E contraction instead of holding (E, tv) whole.
    R, E = x2d_bf16.shape
    Vp = w.shape[1]                       # already padded to a multiple of 128
    tr = _pick_tile(R, 512, 8)            # row tile
    tv = _pick_tile(Vp, 1024, 128)        # lane-dense vocab tile (v7x-safe size)
    nv = Vp // tv
    w_spec = (_buffered_spec((E, tv), lambda i, j: (0, j), 3)   # deeper prefetch
              if nv >= 3 else pl.BlockSpec((E, tv), lambda i, j: (0, j)))
    return pl.pallas_call(
        lm_head_kernel,
        out_shape=jax.ShapeDtypeStruct((R, Vp), jnp.float32),
        grid=(R // tr, nv),
        in_specs=[
            pl.BlockSpec((tr, E), lambda i, j: (i, 0)),
            w_spec,
            pl.BlockSpec((1, tv), lambda i, j: (0, j)),
        ],
        out_specs=pl.BlockSpec((tr, tv), lambda i, j: (i, j)),
        compiler_params=pltpu.CompilerParams(
            dimension_semantics=("parallel", "parallel"),
            vmem_limit_bytes=_vmem_limit_bytes()),
    )(x2d_bf16, w, b)


# ----------------------------------------------------------------------------
# Deterministic parameter construction (matches the PyTorch _init_weights)
# ----------------------------------------------------------------------------
def init_params(key, *, n_layers, vocab_size, n_embd, n_heads, block_size):
    num_keys = 4 + n_layers * (3 * n_heads + 4)
    keys = iter(jax.random.split(key, num_keys))
    nrm = lambda shp: 0.02 * jax.random.normal(next(keys), shp, jnp.float32)
    hs = n_embd // n_heads
    bf16 = jnp.bfloat16
    vpad = _round_up(vocab_size, 128)     # lane-dense lm_head stores

    lm_w = nrm((vocab_size, n_embd)).T                        # (E, V)
    lm_w = jnp.pad(lm_w, ((0, 0), (0, vpad - vocab_size)))    # (E, Vp)

    params = {
        "tok_emb": nrm((vocab_size, n_embd)),
        "pos_emb": nrm((block_size, n_embd)),
        "lnf_w": jnp.ones((1, n_embd), jnp.float32),
        "lnf_b": jnp.zeros((1, n_embd), jnp.float32),
        "lm_w": lm_w.astype(bf16),                            # (E, Vp) bf16
        "lm_b": jnp.zeros((1, vpad), jnp.float32),
        "blocks": [],
    }
    for _ in range(n_layers):
        # per-head (hs, E) weights (nn.Linear(E, hs)), stacked head-major,
        # transposed to (E, E) with head-major output columns
        wq = jnp.concatenate([nrm((hs, n_embd)) for _ in range(n_heads)], axis=0).T
        wk = jnp.concatenate([nrm((hs, n_embd)) for _ in range(n_heads)], axis=0).T
        wv = jnp.concatenate([nrm((hs, n_embd)) for _ in range(n_heads)], axis=0).T
        blk = {
            "wqkv": jnp.concatenate([wq, wk, wv], axis=1).astype(bf16),  # (E, 3E)
            "wo": nrm((n_embd, n_embd)).T.astype(bf16),
            "bo": jnp.zeros((1, n_embd), jnp.float32),
            "ln1w": jnp.ones((1, n_embd), jnp.float32),
            "ln1b": jnp.zeros((1, n_embd), jnp.float32),
            "ln2w": jnp.ones((1, n_embd), jnp.float32),
            "ln2b": jnp.zeros((1, n_embd), jnp.float32),
            "w1": nrm((4 * n_embd, n_embd)).T.astype(bf16),
            "b1": jnp.zeros((1, 4 * n_embd), jnp.float32),
            "w2": nrm((n_embd, 4 * n_embd)).T.astype(bf16),
            "b2": jnp.zeros((1, n_embd), jnp.float32),
        }
        params["blocks"].append(blk)
    return params


def gptmm_forward(idx, params, *, n_heads):
    B, T = idx.shape
    V, E = params["tok_emb"].shape
    tok_emb = params["tok_emb"][idx]                     # (B, T, E)  glue gather
    pos_emb = params["pos_emb"][:T]                      # (T, E)
    # bf16 residual stream between blocks (halves activation HBM traffic)
    x = (tok_emb + pos_emb[None, :, :]).astype(jnp.bfloat16).reshape(B * T, E)

    bsub = _pick_row_group(B, T)
    n_blocks = len(params["blocks"])
    for li, blk in enumerate(params["blocks"]):
        x = run_transformer_block(
            x, blk, params["lnf_w"], params["lnf_b"],
            n_heads=n_heads, seq_len=T, bsub=bsub,
            apply_final_ln=(li == n_blocks - 1))

    # reference computes logits from tok_emb (not the transformer output)
    logits = run_lm_head(tok_emb.reshape(B * T, E).astype(jnp.bfloat16),
                         params["lm_w"], params["lm_b"])
    logits = logits[:, :V]                               # drop vocab padding
    return (logits.reshape(B, T, V),
            x.reshape(B, T, E).astype(jnp.float32))


if __name__ == "__main__":
    n_layers, vocab_size, n_embd, n_heads, block_size = 2, 64, 32, 4, 8
    B, T = 2, 8

    key = jax.random.PRNGKey(0)
    pkey, ikey = jax.random.split(key)
    params = init_params(pkey, n_layers=n_layers, vocab_size=vocab_size,
                         n_embd=n_embd, n_heads=n_heads, block_size=block_size)
    idx = jax.random.randint(ikey, (B, T), 0, vocab_size, dtype=jnp.int32)

    logits, x_final = gptmm_forward(idx, params, n_heads=n_heads)
    jax.block_until_ready((logits, x_final))
    assert logits.shape == (B, T, vocab_size)
    assert bool(jnp.all(jnp.isfinite(logits))) and bool(jnp.all(jnp.isfinite(x_final)))
    print("KERNEL_OK")
</pallas_src>

<mosaic_0001>
module attributes {stable_mosaic.version = 11 : i64} {
  func.func @transformer_block_kernel(%arg0: i32, %arg1: memref<8x32xbf16, #tpu.memory_space<vmem>>, %arg2: memref<32x96xbf16, #tpu.memory_space<vmem>>, %arg3: memref<32x32xbf16, #tpu.memory_space<vmem>>, %arg4: memref<1x32xf32, #tpu.memory_space<vmem>>, %arg5: memref<1x32xf32, #tpu.memory_space<vmem>>, %arg6: memref<1x32xf32, #tpu.memory_space<vmem>>, %arg7: memref<1x32xf32, #tpu.memory_space<vmem>>, %arg8: memref<1x32xf32, #tpu.memory_space<vmem>>, %arg9: memref<32x128xbf16, #tpu.memory_space<vmem>>, %arg10: memref<1x128xf32, #tpu.memory_space<vmem>>, %arg11: memref<128x32xbf16, #tpu.memory_space<vmem>>, %arg12: memref<1x32xf32, #tpu.memory_space<vmem>>, %arg13: memref<1x32xf32, #tpu.memory_space<vmem>>, %arg14: memref<1x32xf32, #tpu.memory_space<vmem>>, %arg15: memref<8x32xbf16, #tpu.memory_space<vmem>>) attributes {dimension_semantics = [#tpu.dimension_semantics<parallel>], iteration_bounds = array<i64: 2>, scalar_prefetch = 0 : i64, scratch_operands = 0 : i64, tpu.core_type = #tpu.core_type<tc>, window_params = [{transform_indices = @transform_0, window_bounds = array<i64: 8, 32>}, {pipeline_mode = #tpu.pipeline_mode<synchronous>, transform_indices = @transform_1, window_bounds = array<i64: 32, 96>}, {pipeline_mode = #tpu.pipeline_mode<synchronous>, transform_indices = @transform_2, window_bounds = array<i64: 32, 32>}, {pipeline_mode = #tpu.pipeline_mode<synchronous>, transform_indices = @transform_3, window_bounds = array<i64: 1, 32>}, {pipeline_mode = #tpu.pipeline_mode<synchronous>, transform_indices = @transform_4, window_bounds = array<i64: 1, 32>}, {pipeline_mode = #tpu.pipeline_mode<synchronous>, transform_indices = @transform_5, window_bounds = array<i64: 1, 32>}, {pipeline_mode = #tpu.pipeline_mode<synchronous>, transform_indices = @transform_6, window_bounds = array<i64: 1, 32>}, {pipeline_mode = #tpu.pipeline_mode<synchronous>, transform_indices = @transform_7, window_bounds = array<i64: 1, 32>}, {pipeline_mode = #tpu.pipeline_mode<synchronous>, transform_indices = @transform_8, window_bounds = array<i64: 32, 128>}, {pipeline_mode = #tpu.pipeline_mode<synchronous>, transform_indices = @transform_9, window_bounds = array<i64: 1, 128>}, {pipeline_mode = #tpu.pipeline_mode<synchronous>, transform_indices = @transform_10, window_bounds = array<i64: 128, 32>}, {pipeline_mode = #tpu.pipeline_mode<synchronous>, transform_indices = @transform_11, window_bounds = array<i64: 1, 32>}, {pipeline_mode = #tpu.pipeline_mode<synchronous>, transform_indices = @transform_12, window_bounds = array<i64: 1, 32>}, {pipeline_mode = #tpu.pipeline_mode<synchronous>, transform_indices = @transform_13, window_bounds = array<i64: 1, 32>}, {transform_indices = @transform_14, window_bounds = array<i64: 8, 32>}]} {
    %c0 = arith.constant 0 : index
    %c0_0 = arith.constant 0 : index
    %0 = vector.load %arg1[%c0, %c0_0] : memref<8x32xbf16, #tpu.memory_space<vmem>>, vector<8x32xbf16>
    %1 = arith.extf %0 : vector<8x32xbf16> to vector<8x32xf32>
    %c0_1 = arith.constant 0 : index
    %c0_2 = arith.constant 0 : index
    %2 = vector.load %arg5[%c0_1, %c0_2] : memref<1x32xf32, #tpu.memory_space<vmem>>, vector<1x32xf32>
    %3 = vector.shape_cast %2 : vector<1x32xf32> to vector<32xf32>
    %c0_3 = arith.constant 0 : index
    %c0_4 = arith.constant 0 : index
    %4 = vector.load %arg6[%c0_3, %c0_4] : memref<1x32xf32, #tpu.memory_space<vmem>>, vector<1x32xf32>
    %5 = vector.shape_cast %4 : vector<1x32xf32> to vector<32xf32>
    %cst = arith.constant dense<0.000000e+00> : vector<8xf32>
    %6 = vector.multi_reduction <add>, %1, %cst [1] : vector<8x32xf32> to vector<8xf32>
    %7 = vector.shape_cast %6 : vector<8xf32> to vector<8x1xf32>
    %cst_5 = arith.constant 3.200000e+01 : f32
    %8 = vector.broadcast %cst_5 : f32 to vector<8x1xf32>
    %9 = arith.divf %7, %8 : vector<8x1xf32>
    %10 = vector.broadcast %9 : vector<8x1xf32> to vector<8x32xf32>
    %11 = arith.subf %1, %10 : vector<8x32xf32>
    %12 = arith.mulf %11, %11 : vector<8x32xf32>
    %cst_6 = arith.constant dense<0.000000e+00> : vector<8xf32>
    %13 = vector.multi_reduction <add>, %12, %cst_6 [1] : vector<8x32xf32> to vector<8xf32>
    %14 = vector.shape_cast %13 : vector<8xf32> to vector<8x1xf32>
    %cst_7 = arith.constant 3.200000e+01 : f32
    %15 = vector.broadcast %cst_7 : f32 to vector<8x1xf32>
    %16 = arith.divf %14, %15 : vector<8x1xf32>
    %17 = vector.broadcast %9 : vector<8x1xf32> to vector<8x32xf32>
    %18 = arith.subf %1, %17 : vector<8x32xf32>
    %cst_8 = arith.constant 9.99999974E-6 : f32
    %19 = vector.broadcast %cst_8 : f32 to vector<8x1xf32>
    %20 = arith.addf %16, %19 : vector<8x1xf32>
    %21 = math.rsqrt %20 : vector<8x1xf32>
    %22 = vector.broadcast %21 : vector<8x1xf32> to vector<8x32xf32>
    %23 = arith.mulf %18, %22 : vector<8x32xf32>
    %24 = vector.shape_cast %3 : vector<32xf32> to vector<1x32xf32>
    %25 = vector.broadcast %24 : vector<1x32xf32> to vector<8x32xf32>
    %26 = arith.mulf %23, %25 : vector<8x32xf32>
    %27 = vector.shape_cast %5 : vector<32xf32> to vector<1x32xf32>
    %28 = vector.broadcast %27 : vector<1x32xf32> to vector<8x32xf32>
    %29 = arith.addf %26, %28 : vector<8x32xf32>
    %30 = arith.truncf %29 : vector<8x32xf32> to vector<8x32xbf16>
    %c0_9 = arith.constant 0 : index
    %c0_10 = arith.constant 0 : index
    %31 = vector.load %arg2[%c0_9, %c0_10] : memref<32x96xbf16, #tpu.memory_space<vmem>>, vector<32x96xbf16>
    %cst_11 = arith.constant dense<0.000000e+00> : vector<8x96xf32>
    %32 = tpu.matmul %30, %31, %cst_11 {dimension_numbers = #tpu.dot_dimension_numbers<[1], [0], [0], [1], [0, 0, 1, 1], [], []>} : vector<8x32xbf16>, vector<32x96xbf16>, vector<8x96xf32> -> vector<8x96xf32>
    %33 = tpu.iota {dimensions = array<i32: 0>} : vector<8x8xi32>
    %34 = tpu.iota {dimensions = array<i32: 1>} : vector<8x8xi32>
    %35 = arith.cmpi sle, %34, %33 : vector<8x8xi32>
    %36 = vector.shape_cast %35 : vector<8x8xi1> to vector<1x8x8xi1>
    %37 = vector.extract_strided_slice %32 {offsets = [0, 0], sizes = [8, 32], strides = [1, 1]} : vector<8x96xf32> to vector<8x32xf32>
    %38 = vector.shape_cast %37 : vector<8x32xf32> to vector<8x4x8xf32>
    %39 = vector.extract_strided_slice %32 {offsets = [0, 32], sizes = [8, 32], strides = [1, 1]} : vector<8x96xf32> to vector<8x32xf32>
    %40 = vector.shape_cast %39 : vector<8x32xf32> to vector<8x4x8xf32>
    %41 = vector.extract_strided_slice %32 {offsets = [0, 64], sizes = [8, 32], strides = [1, 1]} : vector<8x96xf32> to vector<8x32xf32>
    %42 = vector.shape_cast %41 : vector<8x32xf32> to vector<8x4x8xf32>
    %43 = tpu.transpose %38, [1, 0, 2] : vector<8x4x8xf32> -> vector<4x8x8xf32>
    %44 = tpu.transpose %40, [1, 0, 2] : vector<8x4x8xf32> -> vector<4x8x8xf32>
    %45 = tpu.transpose %42, [1, 0, 2] : vector<8x4x8xf32> -> vector<4x8x8xf32>
    %46 = arith.truncf %43 : vector<4x8x8xf32> to vector<4x8x8xbf16>
    %47 = arith.truncf %44 : vector<4x8x8xf32> to vector<4x8x8xbf16>
    "tpu.trace_start"() <{level = 10 : i32, message = "hqd,hkd->hqk"}> : () -> ()
    %cst_12 = arith.constant dense<0.000000e+00> : vector<4x8x8xf32>
    %48 = tpu.matmul %46, %47, %cst_12 {dimension_numbers = #tpu.dot_dimension_numbers<[2], [2], [1], [1], [0, 0, 0, 1, 1, 1], [0], [0]>} : vector<4x8x8xbf16>, vector<4x8x8xbf16>, vector<4x8x8xf32> -> vector<4x8x8xf32>
    "tpu.trace_stop"() : () -> ()
    %cst_13 = arith.constant 0.176776692 : f32
    %49 = vector.broadcast %cst_13 : f32 to vector<4x8x8xf32>
    %50 = arith.mulf %48, %49 : vector<4x8x8xf32>
    %cst_14 = arith.constant -1.000000e+30 : f32
    %51 = vector.shape_cast %36 : vector<1x8x8xi1> to vector<1x8x8xi1>
    %52 = vector.broadcast %51 : vector<1x8x8xi1> to vector<4x8x8xi1>
    %53 = vector.broadcast %cst_14 : f32 to vector<4x8x8xf32>
    %54 = arith.select %52, %50, %53 : vector<4x8x8xi1>, vector<4x8x8xf32>
    %cst_15 = arith.constant dense<0xFF800000> : vector<4x8xf32>
    %55 = vector.multi_reduction <maximumf>, %54, %cst_15 [2] : vector<4x8x8xf32> to vector<4x8xf32>
    %56 = vector.shape_cast %55 : vector<4x8xf32> to vector<4x8x1xf32>
    %57 = vector.broadcast %56 : vector<4x8x1xf32> to vector<4x8x8xf32>
    %58 = arith.subf %54, %57 : vector<4x8x8xf32>
    %59 = math.exp %58 : vector<4x8x8xf32>
    %cst_16 = arith.constant dense<0.000000e+00> : vector<4x8xf32>
    %60 = vector.multi_reduction <add>, %59, %cst_16 [2] : vector<4x8x8xf32> to vector<4x8xf32>
    %61 = vector.shape_cast %60 : vector<4x8xf32> to vector<4x8x1xf32>
    %62 = tpu.reciprocal %61 {approx = true} : vector<4x8x1xf32> -> vector<4x8x1xf32>
    %63 = vector.broadcast %62 : vector<4x8x1xf32> to vector<4x8x8xf32>
    %64 = arith.mulf %59, %63 : vector<4x8x8xf32>
    %65 = arith.truncf %64 : vector<4x8x8xf32> to vector<4x8x8xbf16>
    %66 = arith.truncf %45 : vector<4x8x8xf32> to vector<4x8x8xbf16>
    "tpu.trace_start"() <{level = 10 : i32, message = "hqk,hkd->hqd"}> : () -> ()
    %cst_17 = arith.constant dense<0.000000e+00> : vector<4x8x8xf32>
    %67 = tpu.matmul %65, %66, %cst_17 {dimension_numbers = #tpu.dot_dimension_numbers<[2], [1], [1], [2], [0, 0, 0, 1, 1, 2], [0], [0]>} : vector<4x8x8xbf16>, vector<4x8x8xbf16>, vector<4x8x8xf32> -> vector<4x8x8xf32>
    "tpu.trace_stop"() : () -> ()
    %68 = tpu.transpose %67, [1, 0, 2] : vector<4x8x8xf32> -> vector<8x4x8xf32>
    %69 = vector.shape_cast %68 : vector<8x4x8xf32> to vector<8x32xf32>
    %70 = arith.truncf %69 : vector<8x32xf32> to vector<8x32xbf16>
    %c0_18 = arith.constant 0 : index
    %c0_19 = arith.constant 0 : index
    %71 = vector.load %arg3[%c0_18, %c0_19] : memref<32x32xbf16, #tpu.memory_space<vmem>>, vector<32x32xbf16>
    %cst_20 = arith.constant dense<0.000000e+00> : vector<8x32xf32>
    %72 = tpu.matmul %70, %71, %cst_20 {dimension_numbers = #tpu.dot_dimension_numbers<[1], [0], [0], [1], [0, 0, 1, 1], [], []>} : vector<8x32xbf16>, vector<32x32xbf16>, vector<8x32xf32> -> vector<8x32xf32>
    %73 = arith.addf %1, %72 : vector<8x32xf32>
    %c0_21 = arith.constant 0 : index
    %c0_22 = arith.constant 0 : index
    %74 = vector.load %arg4[%c0_21, %c0_22] : memref<1x32xf32, #tpu.memory_space<vmem>>, vector<1x32xf32>
    %75 = vector.shape_cast %74 : vector<1x32xf32> to vector<32xf32>
    %76 = vector.shape_cast %75 : vector<32xf32> to vector<1x32xf32>
    %77 = vector.broadcast %76 : vector<1x32xf32> to vector<8x32xf32>
    %78 = arith.addf %73, %77 : vector<8x32xf32>
    %c0_23 = arith.constant 0 : index
    %c0_24 = arith.constant 0 : index
    %79 = vector.load %arg7[%c0_23, %c0_24] : memref<1x32xf32, #tpu.memory_space<vmem>>, vector<1x32xf32>
    %80 = vector.shape_cast %79 : vector<1x32xf32> to vector<32xf32>
    %c0_25 = arith.constant 0 : index
    %c0_26 = arith.constant 0 : index
    %81 = vector.load %arg8[%c0_25, %c0_26] : memref<1x32xf32, #tpu.memory_space<vmem>>, vector<1x32xf32>
    %82 = vector.shape_cast %81 : vector<1x32xf32> to vector<32xf32>
    %cst_27 = arith.constant dense<0.000000e+00> : vector<8xf32>
    %83 = vector.multi_reduction <add>, %78, %cst_27 [1] : vector<8x32xf32> to vector<8xf32>
    %84 = vector.shape_cast %83 : vector<8xf32> to vector<8x1xf32>
    %cst_28 = arith.constant 3.200000e+01 : f32
    %85 = vector.broadcast %cst_28 : f32 to vector<8x1xf32>
    %86 = arith.divf %84, %85 : vector<8x1xf32>
    %87 = vector.broadcast %86 : vector<8x1xf32> to vector<8x32xf32>
    %88 = arith.subf %78, %87 : vector<8x32xf32>
    %89 = arith.mulf %88, %88 : vector<8x32xf32>
    %cst_29 = arith.constant dense<0.000000e+00> : vector<8xf32>
    %90 = vector.multi_reduction <add>, %89, %cst_29 [1] : vector<8x32xf32> to vector<8xf32>
    %91 = vector.shape_cast %90 : vector<8xf32> to vector<8x1xf32>
    %cst_30 = arith.constant 3.200000e+01 : f32
    %92 = vector.broadcast %cst_30 : f32 to vector<8x1xf32>
    %93 = arith.divf %91, %92 : vector<8x1xf32>
    %94 = vector.broadcast %86 : vector<8x1xf32> to vector<8x32xf32>
    %95 = arith.subf %78, %94 : vector<8x32xf32>
    %cst_31 = arith.constant 9.99999974E-6 : f32
    %96 = vector.broadcast %cst_31 : f32 to vector<8x1xf32>
    %97 = arith.addf %93, %96 : vector<8x1xf32>
    %98 = math.rsqrt %97 : vector<8x1xf32>
    %99 = vector.broadcast %98 : vector<8x1xf32> to vector<8x32xf32>
    %100 = arith.mulf %95, %99 : vector<8x32xf32>
    %101 = vector.shape_cast %80 : vector<32xf32> to vector<1x32xf32>
    %102 = vector.broadcast %101 : vector<1x32xf32> to vector<8x32xf32>
    %103 = arith.mulf %100, %102 : vector<8x32xf32>
    %104 = vector.shape_cast %82 : vector<32xf32> to vector<1x32xf32>
    %105 = vector.broadcast %104 : vector<1x32xf32> to vector<8x32xf32>
    %106 = arith.addf %103, %105 : vector<8x32xf32>
    %107 = arith.truncf %106 : vector<8x32xf32> to vector<8x32xbf16>
    %c0_32 = arith.constant 0 : index
    %c0_33 = arith.constant 0 : index
    %108 = vector.load %arg9[%c0_32, %c0_33] : memref<32x128xbf16, #tpu.memory_space<vmem>>, vector<32x128xbf16>
    %cst_34 = arith.constant dense<0.000000e+00> : vector<8x128xf32>
    %109 = tpu.matmul %107, %108, %cst_34 {dimension_numbers = #tpu.dot_dimension_numbers<[1], [0], [0], [1], [0, 0, 1, 1], [], []>} : vector<8x32xbf16>, vector<32x128xbf16>, vector<8x128xf32> -> vector<8x128xf32>
    %c0_35 = arith.constant 0 : index
    %c0_36 = arith.constant 0 : index
    %110 = vector.load %arg10[%c0_35, %c0_36] : memref<1x128xf32, #tpu.memory_space<vmem>>, vector<1x128xf32>
    %111 = vector.shape_cast %110 : vector<1x128xf32> to vector<128xf32>
    %112 = vector.shape_cast %111 : vector<128xf32> to vector<1x128xf32>
    %113 = vector.broadcast %112 : vector<1x128xf32> to vector<8x128xf32>
    %114 = arith.addf %109, %113 : vector<8x128xf32>
    %cst_37 = arith.constant 0.000000e+00 : f32
    %115 = vector.broadcast %cst_37 : f32 to vector<8x128xf32>
    %116 = arith.maximumf %114, %115 : vector<8x128xf32>
    %117 = arith.truncf %116 : vector<8x128xf32> to vector<8x128xbf16>
    %c0_38 = arith.constant 0 : index
    %c0_39 = arith.constant 0 : index
    %118 = vector.load %arg11[%c0_38, %c0_39] : memref<128x32xbf16, #tpu.memory_space<vmem>>, vector<128x32xbf16>
    %cst_40 = arith.constant dense<0.000000e+00> : vector<8x32xf32>
    %119 = tpu.matmul %117, %118, %cst_40 {dimension_numbers = #tpu.dot_dimension_numbers<[1], [0], [0], [1], [0, 0, 1, 1], [], []>} : vector<8x128xbf16>, vector<128x32xbf16>, vector<8x32xf32> -> vector<8x32xf32>
    %c0_41 = arith.constant 0 : index
    %c0_42 = arith.constant 0 : index
    %120 = vector.load %arg12[%c0_41, %c0_42] : memref<1x32xf32, #tpu.memory_space<vmem>>, vector<1x32xf32>
    %121 = vector.shape_cast %120 : vector<1x32xf32> to vector<32xf32>
    %122 = vector.shape_cast %121 : vector<32xf32> to vector<1x32xf32>
    %123 = vector.broadcast %122 : vector<1x32xf32> to vector<8x32xf32>
    %124 = arith.addf %119, %123 : vector<8x32xf32>
    %125 = arith.addf %78, %124 : vector<8x32xf32>
    %126 = arith.truncf %125 : vector<8x32xf32> to vector<8x32xbf16>
    %c0_43 = arith.constant 0 : index
    %c0_44 = arith.constant 0 : index
    %127 = vector.load %arg15[%c0_43, %c0_44] : memref<8x32xbf16, #tpu.memory_space<vmem>>, vector<8x32xbf16>
    tpu.vector_store %arg15[%c0_43, %c0_44], %126 {strides = array<i32>} : memref<8x32xbf16, #tpu.memory_space<vmem>>, vector<8x32xbf16>,
    return
  }
  func.func @transform_0(%arg0: i32) -> (i32, i32) {
    %c0_i32 = arith.constant 0 : i32
    %c0_i32_0 = arith.constant 0 : i32
    return %arg0, %c0_i32 : i32, i32
  }
  func.func @transform_1(%arg0: i32) -> (i32, i32) {
    %c0_i32 = arith.constant 0 : i32
    %c0_i32_0 = arith.constant 0 : i32
    %c0_i32_1 = arith.constant 0 : i32
    return %c0_i32, %c0_i32_0 : i32, i32
  }
  func.func @transform_2(%arg0: i32) -> (i32, i32) {
    %c0_i32 = arith.constant 0 : i32
    %c0_i32_0 = arith.constant 0 : i32
    %c0_i32_1 = arith.constant 0 : i32
    return %c0_i32, %c0_i32_0 : i32, i32
  }
  func.func @transform_3(%arg0: i32) -> (i32, i32) {
    %c0_i32 = arith.constant 0 : i32
    %c0_i32_0 = arith.constant 0 : i32
    %c0_i32_1 = arith.constant 0 : i32
    return %c0_i32, %c0_i32_0 : i32, i32
  }
  func.func @transform_4(%arg0: i32) -> (i32, i32) {
    %c0_i32 = arith.constant 0 : i32
    %c0_i32_0 = arith.constant 0 : i32
    %c0_i32_1 = arith.constant 0 : i32
    return %c0_i32, %c0_i32_0 : i32, i32
  }
  func.func @transform_5(%arg0: i32) -> (i32, i32) {
    %c0_i32 = arith.constant 0 : i32
    %c0_i32_0 = arith.constant 0 : i32
    %c0_i32_1 = arith.constant 0 : i32
    return %c0_i32, %c0_i32_0 : i32, i32
  }
  func.func @transform_6(%arg0: i32) -> (i32, i32) {
    %c0_i32 = arith.constant 0 : i32
    %c0_i32_0 = arith.constant 0 : i32
    %c0_i32_1 = arith.constant 0 : i32
    return %c0_i32, %c0_i32_0 : i32, i32
  }
  func.func @transform_7(%arg0: i32) -> (i32, i32) {
    %c0_i32 = arith.constant 0 : i32
    %c0_i32_0 = arith.constant 0 : i32
    %c0_i32_1 = arith.constant 0 : i32
    return %c0_i32, %c0_i32_0 : i32, i32
  }
  func.func @transform_8(%arg0: i32) -> (i32, i32) {
    %c0_i32 = arith.constant 0 : i32
    %c0_i32_0 = arith.constant 0 : i32
    %c0_i32_1 = arith.constant 0 : i32
    return %c0_i32, %c0_i32_0 : i32, i32
  }
  func.func @transform_9(%arg0: i32) -> (i32, i32) {
    %c0_i32 = arith.constant 0 : i32
    %c0_i32_0 = arith.constant 0 : i32
    %c0_i32_1 = arith.constant 0 : i32
    return %c0_i32, %c0_i32_0 : i32, i32
  }
  func.func @transform_10(%arg0: i32) -> (i32, i32) {
    %c0_i32 = arith.constant 0 : i32
    %c0_i32_0 = arith.constant 0 : i32
    %c0_i32_1 = arith.constant 0 : i32
    return %c0_i32, %c0_i32_0 : i32, i32
  }
  func.func @transform_11(%arg0: i32) -> (i32, i32) {
    %c0_i32 = arith.constant 0 : i32
    %c0_i32_0 = arith.constant 0 : i32
    %c0_i32_1 = arith.constant 0 : i32
    return %c0_i32, %c0_i32_0 : i32, i32
  }
  func.func @transform_12(%arg0: i32) -> (i32, i32) {
    %c0_i32 = arith.constant 0 : i32
    %c0_i32_0 = arith.constant 0 : i32
    %c0_i32_1 = arith.constant 0 : i32
    return %c0_i32, %c0_i32_0 : i32, i32
  }
  func.func @transform_13(%arg0: i32) -> (i32, i32) {
    %c0_i32 = arith.constant 0 : i32
    %c0_i32_0 = arith.constant 0 : i32
    %c0_i32_1 = arith.constant 0 : i32
    return %c0_i32, %c0_i32_0 : i32, i32
  }
  func.func @transform_14(%arg0: i32) -> (i32, i32) {
    %c0_i32 = arith.constant 0 : i32
    %c0_i32_0 = arith.constant 0 : i32
    return %arg0, %c0_i32 : i32, i32
  }
}

</mosaic_0001>

<llo_original>
// kernel: tpu_custom_call.1
$region0: #{tpu_custom_call.1}
  #allocation0 [shape = 'u32[]', space=smem, size = 0x4, offset = 0x4, fixed_abs, tag = 'smem constant byte address 0x4 - core index']
  #allocation1 [shape = 'u32[144,128]{1,0:T(1,128)}', space=vmem, size = 0x12000, scoped, tag = 'internal scratch']
  %s0 = inlined_call_operand.vmem [shape: bf16[16,32], index: 0, kind: input, shape index: {}]
  %s1 = inlined_call_operand.vmem [shape: bf16[32,96], index: 1, kind: input, shape index: {}]
  %s2 = inlined_call_operand.vmem [shape: bf16[32,32], index: 2, kind: input, shape index: {}]
  %s3 = inlined_call_operand.vmem [shape: f32[1,32], index: 3, kind: input, shape index: {}]
  %s4 = inlined_call_operand.vmem [shape: f32[1,32], index: 4, kind: input, shape index: {}]
  %s5 = inlined_call_operand.vmem [shape: f32[1,32], index: 5, kind: input, shape index: {}]
  %s6 = inlined_call_operand.vmem [shape: f32[1,32], index: 6, kind: input, shape index: {}]
  %s7 = inlined_call_operand.vmem [shape: f32[1,32], index: 7, kind: input, shape index: {}]
  %s8 = inlined_call_operand.vmem [shape: bf16[32,128], index: 8, kind: input, shape index: {}]
  %s9 = inlined_call_operand.vmem [shape: f32[1,128], index: 9, kind: input, shape index: {}]
  %s10 = inlined_call_operand.vmem [shape: bf16[128,32], index: 10, kind: input, shape index: {}]
  %s11 = inlined_call_operand.vmem [shape: f32[1,32], index: 11, kind: input, shape index: {}]
  %s12 = inlined_call_operand.vmem [shape: f32[1,32], index: 12, kind: input, shape index: {}]
  %s13 = inlined_call_operand.vmem [shape: f32[1,32], index: 13, kind: input, shape index: {}]
  %s14 = inlined_call_operand.hbm [shape: bf16[16,32], index: 14, kind: output, shape index: {}]
  %s15 = sld [smem:[#allocation0]]
  $region89: #{tpu_custom_call.1} parent=0
    _
  %s17 = ssub.s32 1, %s15
  %s18 = scalar_select 0, %s17, %s15
  $region1: #{tpu_custom_call.1} parent=0
    #allocation2 [shape = 'u8[4096]{0}', space=vmem, size = 0x1000, scoped, tag = 'output window, operand 0']
    #allocation3 [shape = 's32[2]{0}', space=sflag, size = 0x8, scoped, tag = 'scoped memory for tpu_custom_call.1']
    %19 = vsyncpa [#allocation3], 0
    %s20 = scalar_lea.sflag [#allocation3], 1
    %21 = vsyncpa %s20, 0
    loop: start=0, step=1, limit=4
    $region2: #{tpu_custom_call.1} parent=1 // loop_pre_header
      _
    $region3: #{tpu_custom_call.1} parent=1 // loop_header
      %s23 = sphi 0, %s27
      %p24 = scmp.ge.s32.totalorder %s23, 4
      %s33 = sphi 0, %s35
      %s36 = sphi 0, %s33
      %s37 = sphi 0, %s36
      %s53 = sphi 0, %s37
      %s57 = sphi 0, %s57
      %s59 = sphi 0, %s57
      %s60 = sphi 0, %s59
      %s74 = sphi 0, %s60
      %s78 = sphi 0, %s78
      %s80 = sphi 0, %s78
      %s81 = sphi 0, %s80
      %s95 = sphi 0, %s81
      %s99 = sphi 0, %s99
      %s101 = sphi 0, %s99
      %s102 = sphi 0, %s101
      %s116 = sphi 0, %s102
      %s120 = sphi 0, %s120
      %s122 = sphi 0, %s120
      %s123 = sphi 0, %s122
      %s137 = sphi 0, %s123
      %s141 = sphi 0, %s141
      %s143 = sphi 0, %s141
      %s144 = sphi 0, %s143
      %s158 = sphi 0, %s144
      %s162 = sphi 0, %s162
      %s164 = sphi 0, %s162
      %s165 = sphi 0, %s164
      %s179 = sphi 0, %s165
      %s183 = sphi 0, %s183
      %s185 = sphi 0, %s183
      %s186 = sphi 0, %s185
      %s200 = sphi 0, %s186
      %s204 = sphi 0, %s204
      %s206 = sphi 0, %s204
      %s207 = sphi 0, %s206
      %s221 = sphi 0, %s207
      %s225 = sphi 0, %s225
      %s227 = sphi 0, %s225
      %s228 = sphi 0, %s227
      %s242 = sphi 0, %s228
      %s246 = sphi 0, %s246
      %s248 = sphi 0, %s246
      %s249 = sphi 0, %s248
      %s263 = sphi 0, %s249
      %s267 = sphi 0, %s267
      %s269 = sphi 0, %s267
      %s270 = sphi 0, %s269
      %s284 = sphi 0, %s270
      %s288 = sphi 0, %s288
      %s290 = sphi 0, %s288
      %s291 = sphi 0, %s290
      %s305 = sphi 0, %s291
      %s309 = sphi 0, %s309
      %s311 = sphi 0, %s309
      %s312 = sphi 0, %s311
      %s326 = sphi 0, %s312
      %s332 = sphi 0, %s334
      %s335 = sphi 0, %s332
      %s336 = sphi 0, %s335
      %s352 = sphi 0, %s336
    $region4: #{tpu_custom_call.1} parent=1 // loop_header_branch
      %26 = sbr.rel (%p24) target = $region8
    $region5: #{tpu_custom_call.1} parent=1 // loop_body
      %s28 = ssub.s32 %s23, 1
      %s29 = ssub.s32 %s23, 2
      %s30 = sadd.s32 %s23, 1
      %s31 = ssub.s32 %s23, %s30
      %p32 = scmp.eq.s32.totalorder %s31, 0
      %s34 = sadd.s32 %s33, 1
      %s35 = scalar_select %p32, %s33, %s34
      %p38 = pneg %p32
      %p39 = scmp.eq.s32.totalorder %s23, 1
      %p40 = por %p38, %p39
      %p41 = scmp.ne.s32.totalorder %s33, %s36
      %p42 = scmp.eq.s32.totalorder %s23, 0
      %p43 = por %p41, %p42
      %p44 = scmp.ne.s32.totalorder %s33, %s36
      %p45 = scmp.eq.s32.totalorder %s28, 1
      %p46 = por %p44, %p45
      %p47 = scmp.ne.s32.totalorder %s36, %s37
      %p48 = scmp.eq.s32.totalorder %s28, 0
      %p49 = por %p47, %p48
      %p50 = scmp.ne.s32.totalorder %s36, %s37
      %p51 = scmp.eq.s32.totalorder %s29, 1
      %p52 = por %p50, %p51
      %p54 = scmp.ne.s32.totalorder %s37, %s53
      %p55 = scmp.eq.s32.totalorder %s29, 0
      %p56 = por %p54, %p55
      %s58 = sadd.s32 %s57, 1
      %p61 = scmp.eq.s32.totalorder %s23, 1
      %p62 = scmp.ne.s32.totalorder %s57, %s59
      %p63 = scmp.eq.s32.totalorder %s23, 0
      %p64 = por %p62, %p63
      %p65 = scmp.ne.s32.totalorder %s57, %s59
      %p66 = scmp.eq.s32.totalorder %s28, 1
      %p67 = por %p65, %p66
      %p68 = scmp.ne.s32.totalorder %s59, %s60
      %p69 = scmp.eq.s32.totalorder %s28, 0
      %p70 = por %p68, %p69
      %p71 = scmp.ne.s32.totalorder %s59, %s60
      %p72 = scmp.eq.s32.totalorder %s29, 1
      %p73 = por %p71, %p72
      %p75 = scmp.ne.s32.totalorder %s60, %s74
      %p76 = scmp.eq.s32.totalorder %s29, 0
      %p77 = por %p75, %p76
      %s79 = sadd.s32 %s78, 1
      %p82 = scmp.eq.s32.totalorder %s23, 1
      %p83 = scmp.ne.s32.totalorder %s78, %s80
      %p84 = scmp.eq.s32.totalorder %s23, 0
      %p85 = por %p83, %p84
      %p86 = scmp.ne.s32.totalorder %s78, %s80
      %p87 = scmp.eq.s32.totalorder %s28, 1
      %p88 = por %p86, %p87
      %p89 = scmp.ne.s32.totalorder %s80, %s81
      %p90 = scmp.eq.s32.totalorder %s28, 0
      %p91 = por %p89, %p90
      %p92 = scmp.ne.s32.totalorder %s80, %s81
      %p93 = scmp.eq.s32.totalorder %s29, 1
      %p94 = por %p92, %p93
      %p96 = scmp.ne.s32.totalorder %s81, %s95
      %p97 = scmp.eq.s32.totalorder %s29, 0
      %p98 = por %p96, %p97
      %s100 = sadd.s32 %s99, 1
      %p103 = scmp.eq.s32.totalorder %s23, 1
      %p104 = scmp.ne.s32.totalorder %s99, %s101
      %p105 = scmp.eq.s32.totalorder %s23, 0
      %p106 = por %p104, %p105
      %p107 = scmp.ne.s32.totalorder %s99, %s101
      %p108 = scmp.eq.s32.totalorder %s28, 1
      %p109 = por %p107, %p108
      %p110 = scmp.ne.s32.totalorder %s101, %s102
      %p111 = scmp.eq.s32.totalorder %s28, 0
      %p112 = por %p110, %p111
      %p113 = scmp.ne.s32.totalorder %s101, %s102
      %p114 = scmp.eq.s32.totalorder %s29, 1
      %p115 = por %p113, %p114
      %p117 = scmp.ne.s32.totalorder %s102, %s116
      %p118 = scmp.eq.s32.totalorder %s29, 0
      %p119 = por %p117, %p118
      %s121 = sadd.s32 %s120, 1
      %p124 = scmp.eq.s32.totalorder %s23, 1
      %p125 = scmp.ne.s32.totalorder %s120, %s122
      %p126 = scmp.eq.s32.totalorder %s23, 0
      %p127 = por %p125, %p126
      %p128 = scmp.ne.s32.totalorder %s120, %s122
      %p129 = scmp.eq.s32.totalorder %s28, 1
      %p130 = por %p128, %p129
      %p131 = scmp.ne.s32.totalorder %s122, %s123
      %p132 = scmp.eq.s32.totalorder %s28, 0
      %p133 = por %p131, %p132
      %p134 = scmp.ne.s32.totalorder %s122, %s123
      %p135 = scmp.eq.s32.totalorder %s29, 1
      %p136 = por %p134, %p135
      %p138 = scmp.ne.s32.totalorder %s123, %s137
      %p139 = scmp.eq.s32.totalorder %s29, 0
      %p140 = por %p138, %p139
      %s142 = sadd.s32 %s141, 1
      %p145 = scmp.eq.s32.totalorder %s23, 1
      %p146 = scmp.ne.s32.totalorder %s141, %s143
      %p147 = scmp.eq.s32.totalorder %s23, 0
      %p148 = por %p146, %p147
      %p149 = scmp.ne.s32.totalorder %s141, %s143
      %p150 = scmp.eq.s32.totalorder %s28, 1
      %p151 = por %p149, %p150
      %p152 = scmp.ne.s32.totalorder %s143, %s144
      %p153 = scmp.eq.s32.totalorder %s28, 0
      %p154 = por %p152, %p153
      %p155 = scmp.ne.s32.totalorder %s143, %s144
      %p156 = scmp.eq.s32.totalorder %s29, 1
      %p157 = por %p155, %p156
      %p159 = scmp.ne.s32.totalorder %s144, %s158
      %p160 = scmp.eq.s32.totalorder %s29, 0
      %p161 = por %p159, %p160
      %s163 = sadd.s32 %s162, 1
      %p166 = scmp.eq.s32.totalorder %s23, 1
      %p167 = scmp.ne.s32.totalorder %s162, %s164
      %p168 = scmp.eq.s32.totalorder %s23, 0
      %p169 = por %p167, %p168
      %p170 = scmp.ne.s32.totalorder %s162, %s164
      %p171 = scmp.eq.s32.totalorder %s28, 1
      %p172 = por %p170, %p171
      %p173 = scmp.ne.s32.totalorder %s164, %s165
      %p174 = scmp.eq.s32.totalorder %s28, 0
      %p175 = por %p173, %p174
      %p176 = scmp.ne.s32.totalorder %s164, %s165
      %p177 = scmp.eq.s32.totalorder %s29, 1
      %p178 = por %p176, %p177
      %p180 = scmp.ne.s32.totalorder %s165, %s179
      %p181 = scmp.eq.s32.totalorder %s29, 0
      %p182 = por %p180, %p181
      %s184 = sadd.s32 %s183, 1
      %p187 = scmp.eq.s32.totalorder %s23, 1
      %p188 = scmp.ne.s32.totalorder %s183, %s185
      %p189 = scmp.eq.s32.totalorder %s23, 0
      %p190 = por %p188, %p189
      %p191 = scmp.ne.s32.totalorder %s183, %s185
      %p192 = scmp.eq.s32.totalorder %s28, 1
      %p193 = por %p191, %p192
      %p194 = scmp.ne.s32.totalorder %s185, %s186
      %p195 = scmp.eq.s32.totalorder %s28, 0
      %p196 = por %p194, %p195
      %p197 = scmp.ne.s32.totalorder %s185, %s186
      %p198 = scmp.eq.s32.totalorder %s29, 1
      %p199 = por %p197, %p198
      %p201 = scmp.ne.s32.totalorder %s186, %s200
      %p202 = scmp.eq.s32.totalorder %s29, 0
      %p203 = por %p201, %p202
      %s205 = sadd.s32 %s204, 1
      %p208 = scmp.eq.s32.totalorder %s23, 1
      %p209 = scmp.ne.s32.totalorder %s204, %s206
      %p210 = scmp.eq.s32.totalorder %s23, 0
      %p211 = por %p209, %p210
      %p212 = scmp.ne.s32.totalorder %s204, %s206
      %p213 = scmp.eq.s32.totalorder %s28, 1
      %p214 = por %p212, %p213
      %p215 = scmp.ne.s32.totalorder %s206, %s207
      %p216 = scmp.eq.s32.totalorder %s28, 0
      %p217 = por %p215, %p216
      %p218 = scmp.ne.s32.totalorder %s206, %s207
      %p219 = scmp.eq.s32.totalorder %s29, 1
      %p220 = por %p218, %p219
      %p222 = scmp.ne.s32.totalorder %s207, %s221
      %p223 = scmp.eq.s32.totalorder %s29, 0
      %p224 = por %p222, %p223
      %s226 = sadd.s32 %s225, 1
      %p229 = scmp.eq.s32.totalorder %s23, 1
      %p230 = scmp.ne.s32.totalorder %s225, %s227
      %p231 = scmp.eq.s32.totalorder %s23, 0
      %p232 = por %p230, %p231
      %p233 = scmp.ne.s32.totalorder %s225, %s227
      %p234 = scmp.eq.s32.totalorder %s28, 1
      %p235 = por %p233, %p234
      %p236 = scmp.ne.s32.totalorder %s227, %s228
      %p237 = scmp.eq.s32.totalorder %s28, 0
      %p238 = por %p236, %p237
      %p239 = scmp.ne.s32.totalorder %s227, %s228
      %p240 = scmp.eq.s32.totalorder %s29, 1
      %p241 = por %p239, %p240
      %p243 = scmp.ne.s32.totalorder %s228, %s242
      %p244 = scmp.eq.s32.totalorder %s29, 0
      %p245 = por %p243, %p244
      %s247 = sadd.s32 %s246, 1
      %p250 = scmp.eq.s32.totalorder %s23, 1
      %p251 = scmp.ne.s32.totalorder %s246, %s248
      %p252 = scmp.eq.s32.totalorder %s23, 0
      %p253 = por %p251, %p252
      %p254 = scmp.ne.s32.totalorder %s246, %s248
      %p255 = scmp.eq.s32.totalorder %s28, 1
      %p256 = por %p254, %p255
      %p257 = scmp.ne.s32.totalorder %s248, %s249
      %p258 = scmp.eq.s32.totalorder %s28, 0
      %p259 = por %p257, %p258
      %p260 = scmp.ne.s32.totalorder %s248, %s249
      %p261 = scmp.eq.s32.totalorder %s29, 1
      %p262 = por %p260, %p261
      %p264 = scmp.ne.s32.totalorder %s249, %s263
      %p265 = scmp.eq.s32.totalorder %s29, 0
      %p266 = por %p264, %p265
      %s268 = sadd.s32 %s267, 1
      %p271 = scmp.eq.s32.totalorder %s23, 1
      %p272 = scmp.ne.s32.totalorder %s267, %s269
      %p273 = scmp.eq.s32.totalorder %s23, 0
      %p274 = por %p272, %p273
      %p275 = scmp.ne.s32.totalorder %s267, %s269
      %p276 = scmp.eq.s32.totalorder %s28, 1
      %p277 = por %p275, %p276
      %p278 = scmp.ne.s32.totalorder %s269, %s270
      %p279 = scmp.eq.s32.totalorder %s28, 0
      %p280 = por %p278, %p279
      %p281 = scmp.ne.s32.totalorder %s269, %s270
      %p282 = scmp.eq.s32.totalorder %s29, 1
      %p283 = por %p281, %p282
      %p285 = scmp.ne.s32.totalorder %s270, %s284
      %p286 = scmp.eq.s32.totalorder %s29, 0
      %p287 = por %p285, %p286
      %s289 = sadd.s32 %s288, 1
      %p292 = scmp.eq.s32.totalorder %s23, 1
      %p293 = scmp.ne.s32.totalorder %s288, %s290
      %p294 = scmp.eq.s32.totalorder %s23, 0
      %p295 = por %p293, %p294
      %p296 = scmp.ne.s32.totalorder %s288, %s290
      %p297 = scmp.eq.s32.totalorder %s28, 1
      %p298 = por %p296, %p297
      %p299 = scmp.ne.s32.totalorder %s290, %s291
      %p300 = scmp.eq.s32.totalorder %s28, 0
      %p301 = por %p299, %p300
      %p302 = scmp.ne.s32.totalorder %s290, %s291
      %p303 = scmp.eq.s32.totalorder %s29, 1
      %p304 = por %p302, %p303
      %p306 = scmp.ne.s32.totalorder %s291, %s305
      %p307 = scmp.eq.s32.totalorder %s29, 0
      %p308 = por %p306, %p307
      %s310 = sadd.s32 %s309, 1
      %p313 = scmp.eq.s32.totalorder %s23, 1
      %p314 = scmp.ne.s32.totalorder %s309, %s311
      %p315 = scmp.eq.s32.totalorder %s23, 0
      %p316 = por %p314, %p315
      %p317 = scmp.ne.s32.totalorder %s309, %s311
      %p318 = scmp.eq.s32.totalorder %s28, 1
      %p319 = por %p317, %p318
      %p320 = scmp.ne.s32.totalorder %s311, %s312
      %p321 = scmp.eq.s32.totalorder %s28, 0
      %p322 = por %p320, %p321
      %p323 = scmp.ne.s32.totalorder %s311, %s312
      %p324 = scmp.eq.s32.totalorder %s29, 1
      %p325 = por %p323, %p324
      %p327 = scmp.ne.s32.totalorder %s312, %s326
      %p328 = scmp.eq.s32.totalorder %s29, 0
      %p329 = por %p327, %p328
      %s330 = ssub.s32 %s23, %s30
      %p331 = scmp.eq.s32.totalorder %s330, 0
      %s333 = sadd.s32 %s332, 1
      %s334 = scalar_select %p331, %s332, %s333
      %p337 = pneg %p331
      %p338 = scmp.eq.s32.totalorder %s23, 1
      %p339 = por %p337, %p338
      %p340 = scmp.ne.s32.totalorder %s332, %s335
      %p341 = scmp.eq.s32.totalorder %s23, 0
      %p342 = por %p340, %p341
      %p343 = scmp.ne.s32.totalorder %s332, %s335
      %p344 = scmp.eq.s32.totalorder %s28, 1
      %p345 = por %p343, %p344
      %p346 = scmp.ne.s32.totalorder %s335, %s336
      %p347 = scmp.eq.s32.totalorder %s28, 0
      %p348 = por %p346, %p347
      %p349 = scmp.ne.s32.totalorder %s335, %s336
      %p350 = scmp.eq.s32.totalorder %s29, 1
      %p351 = por %p349, %p350
      %p353 = scmp.ne.s32.totalorder %s336, %s352
      %p354 = scmp.eq.s32.totalorder %s29, 0
      %p355 = por %p353, %p354
      %p356 = scmp.le.s32.totalorder 1, %s23
      %p357 = scmp.lt.s32.totalorder %s23, 3
      %p358 = pnand %p356, %p357
      %p359 = pneg %p358
      // Predicated region
      $region9: #{tpu_custom_call.1} parent=5 // pred_check
        _
      $region10: #{tpu_custom_call.1} parent=5 // pred_check_branch
        %361 = sbr.rel (%p358) target = $region12
      $region11: #{tpu_custom_call.1} parent=5 // pred_region
        %s362 = ssub.s32 %s23, 1
        // Predicated region
        $region13: #{tpu_custom_call.1} parent=11 // pred_check
          %p363 = pneg %p70
        $region14: #{tpu_custom_call.1} parent=11 // pred_check_branch
          %365 = sbr.rel (%p363) target = $region16
        $region15: #{tpu_custom_call.1} parent=11 // pred_region
          _
        $region16: #{tpu_custom_call.1} parent=11 // pred_fallthru
          _
        // Predicated region
        $region17: #{tpu_custom_call.1} parent=11 // pred_check
          %p366 = pneg %p91
        $region18: #{tpu_custom_call.1} parent=11 // pred_check_branch
          %368 = sbr.rel (%p366) target = $region20
        $region19: #{tpu_custom_call.1} parent=11 // pred_region
          _
        $region20: #{tpu_custom_call.1} parent=11 // pred_fallthru
          _
        // Predicated region
        $region21: #{tpu_custom_call.1} parent=11 // pred_check
          %p369 = pneg %p112
        $region22: #{tpu_custom_call.1} parent=11 // pred_check_branch
          %371 = sbr.rel (%p369) target = $region24
        $region23: #{tpu_custom_call.1} parent=11 // pred_region
          _
        $region24: #{tpu_custom_call.1} parent=11 // pred_fallthru
          _
        // Predicated region
        $region25: #{tpu_custom_call.1} parent=11 // pred_check
          %p372 = pneg %p133
        $region26: #{tpu_custom_call.1} parent=11 // pred_check_branch
          %374 = sbr.rel (%p372) target = $region28
        $region27: #{tpu_custom_call.1} parent=11 // pred_region
          _
        $region28: #{tpu_custom_call.1} parent=11 // pred_fallthru
          _
        // Predicated region
        $region29: #{tpu_custom_call.1} parent=11 // pred_check
          %p375 = pneg %p154
        $region30: #{tpu_custom_call.1} parent=11 // pred_check_branch
          %377 = sbr.rel (%p375) target = $region32
        $region31: #{tpu_custom_call.1} parent=11 // pred_region
          _
        $region32: #{tpu_custom_call.1} parent=11 // pred_fallthru
          _
        // Predicated region
        $region33: #{tpu_custom_call.1} parent=11 // pred_check
          %p378 = pneg %p175
        $region34: #{tpu_custom_call.1} parent=11 // pred_check_branch
          %380 = sbr.rel (%p378) target = $region36
        $region35: #{tpu_custom_call.1} parent=11 // pred_region
          _
        $region36: #{tpu_custom_call.1} parent=11 // pred_fallthru
          _
        // Predicated region
        $region37: #{tpu_custom_call.1} parent=11 // pred_check
          %p381 = pneg %p196
        $region38: #{tpu_custom_call.1} parent=11 // pred_check_branch
          %383 = sbr.rel (%p381) target = $region40
        $region39: #{tpu_custom_call.1} parent=11 // pred_region
          _
        $region40: #{tpu_custom_call.1} parent=11 // pred_fallthru
          _
        // Predicated region
        $region41: #{tpu_custom_call.1} parent=11 // pred_check
          %p384 = pneg %p217
        $region42: #{tpu_custom_call.1} parent=11 // pred_check_branch
          %386 = sbr.rel (%p384) target = $region44
        $region43: #{tpu_custom_call.1} parent=11 // pred_region
          _
        $region44: #{tpu_custom_call.1} parent=11 // pred_fallthru
          _
        // Predicated region
        $region45: #{tpu_custom_call.1} parent=11 // pred_check
          %p387 = pneg %p238
        $region46: #{tpu_custom_call.1} parent=11 // pred_check_branch
          %389 = sbr.rel (%p387) target = $region48
        $region47: #{tpu_custom_call.1} parent=11 // pred_region
          _
        $region48: #{tpu_custom_call.1} parent=11 // pred_fallthru
          _
        // Predicated region
        $region49: #{tpu_custom_call.1} parent=11 // pred_check
          %p390 = pneg %p259
        $region50: #{tpu_custom_call.1} parent=11 // pred_check_branch
          %392 = sbr.rel (%p390) target = $region52
        $region51: #{tpu_custom_call.1} parent=11 // pred_region
          _
        $region52: #{tpu_custom_call.1} parent=11 // pred_fallthru
          _
        // Predicated region
        $region53: #{tpu_custom_call.1} parent=11 // pred_check
          %p393 = pneg %p280
        $region54: #{tpu_custom_call.1} parent=11 // pred_check_branch
          %395 = sbr.rel (%p393) target = $region56
        $region55: #{tpu_custom_call.1} parent=11 // pred_region
          _
        $region56: #{tpu_custom_call.1} parent=11 // pred_fallthru
          _
        // Predicated region
        $region57: #{tpu_custom_call.1} parent=11 // pred_check
          %p396 = pneg %p301
        $region58: #{tpu_custom_call.1} parent=11 // pred_check_branch
          %398 = sbr.rel (%p396) target = $region60
        $region59: #{tpu_custom_call.1} parent=11 // pred_region
          _
        $region60: #{tpu_custom_call.1} parent=11 // pred_fallthru
          _
        // Predicated region
        $region61: #{tpu_custom_call.1} parent=11 // pred_check
          %p399 = pneg %p322
        $region62: #{tpu_custom_call.1} parent=11 // pred_check_branch
          %401 = sbr.rel (%p399) target = $region64
        $region63: #{tpu_custom_call.1} parent=11 // pred_region
          _
        $region64: #{tpu_custom_call.1} parent=11 // pred_fallthru
          _
      $region12: #{tpu_custom_call.1} parent=5 // pred_fallthru
        _
      %p402 = scmp.lt.s32.totalorder %s23, 2
      // Predicated region
      $region65: #{tpu_custom_call.1} parent=5 // pred_check
        %p403 = pneg %p402
      $region66: #{tpu_custom_call.1} parent=5 // pred_check_branch
        %405 = sbr.rel (%p403) target = $region68
      $region67: #{tpu_custom_call.1} parent=5 // pred_region
        // Predicated region
        $region69: #{tpu_custom_call.1} parent=67 // pred_check
          %p406 = pneg %p43
        $region70: #{tpu_custom_call.1} parent=67 // pred_check_branch
          %408 = sbr.rel (%p406) target = $region72
        $region71: #{tpu_custom_call.1} parent=67 // pred_region
          %p409 = scmp.lt.s32.totalorder %s23, 1
          %s410 = scalar_select %p409, %s23, 1
          %s411 = smul.addr %s410, 4
          %s412 = scalar_lea.vmem %s0, %s411
        $region72: #{tpu_custom_call.1} parent=67 // pred_fallthru
          _
      $region68: #{tpu_custom_call.1} parent=5 // pred_fallthru
        _
      %p413 = scmp.le.s32.totalorder 1, %s23
      %p414 = scmp.lt.s32.totalorder %s23, 3
      %p415 = pnand %p413, %p414
      %p416 = pneg %p415
      // Predicated region
      $region73: #{tpu_custom_call.1} parent=5 // pred_check
        _
      $region74: #{tpu_custom_call.1} parent=5 // pred_check_branch
        %418 = sbr.rel (%p415) target = $region76
      $region75: #{tpu_custom_call.1} parent=5 // pred_region
        %s419 = ssub.s32 %s23, 1
        %p420 = scmp.lt.s32.totalorder %s28, 1
        %s421 = scalar_select %p420, %s28, 1
        %s422 = smul.addr %s421, 4
        %s423 = scalar_lea.vmem %s0, %s422
        %p424 = pneg %p49
        %p425 = pneg %p46
        %p426 = pneg %p70
        %p427 = pneg %p67
        %p428 = pneg %p91
        %p429 = pneg %p88
        %p430 = pneg %p112
        %p431 = pneg %p109
        %p432 = pneg %p133
        %p433 = pneg %p130
        %p434 = pneg %p154
        %p435 = pneg %p151
        %p436 = pneg %p175
        %p437 = pneg %p172
        %p438 = pneg %p196
        %p439 = pneg %p193
        %p440 = pneg %p217
        %p441 = pneg %p214
        %p442 = pneg %p238
        %p443 = pneg %p235
        %p444 = pneg %p259
        %p445 = pneg %p256
        %p446 = pneg %p280
        %p447 = pneg %p277
        %p448 = pneg %p301
        %p449 = pneg %p298
        %p450 = pneg %p322
        %p451 = pneg %p319
        %p452 = pneg %p348
        %p453 = pneg %p345
        %s454 = sand.u32 %s335, 1
        %s455 = scalar_lea.sflag [#allocation3], %s454
        %s456 = sand.u32 %s335, 1
        %s457 = smul.addr %s456, 4
        %s458 = scalar_lea.vmem [#allocation2], %s457
        %p459 = scmp.lt.s32.totalorder %s28, 1
        %s460 = scalar_select %p459, %s28, 1
        %s461 = smul.addr %s460, 4
        %s462 = scalar_lea.vmem %s0, %s461
        %v464 = vld [vmem:[%s462] sm:$0xf]
        %v465 = vunpack.c.l.bf16 %v464
        %v466 = vld [vmem:[%s4] sm:$0x1]
        %v467 = vld [vmem:[%s5] sm:$0x1]
        %vm468 = vcmask 261120
        %v469 = vsel %vm468, %v465, 0.0
        %470 = vadd.xlane.f32.xlu0 %v469
        %v471 = vpop.xlane.xlu0 %470
        %v472 = vrcp.pop 32.0
        %v473 = vmul.f32 %v471, %v472
        %v474 = vsub.f32 %v465, %v473
        %v475 = vmul.f32 %v474, %v474
        %v476 = vsel %vm468, %v475, 0.0
        %477 = vadd.xlane.f32.xlu0 %v476
        %v478 = vpop.xlane.xlu0 %477
        %v479 = vmul.f32 %v478, %v472
        %v480 = vadd.f32 %v479, 1e-05
        %v481 = vrsqrt.pop %v480
        %v482 = vmul.f32 %v474, %v481
        %v484 = vlaneseq
        %v485 = vshrl.u32 %v484, 7
        %v486 = vsub.s32 0, %v485
        %v487 = vrot.slane %v466, %v486
        %v489 = vmul.f32 %v482, %v487
        %v491 = vlaneseq
        %v492 = vshrl.u32 %v491, 7
        %v493 = vsub.s32 0, %v492
        %v494 = vrot.slane %v467, %v493
        %v496 = vadd.f32 %v489, %v494
        %v497 = vpack.c.bf16 %v496, %v496
        %v498 = vld [vmem:[%s1] sm:$0xf]
        %v499 = vld [vmem:[%s1 + $0x4] sm:$0xf]
        %v500 = vld [vmem:[%s1 + $0x8] sm:$0xf]
        %v501 = vld [vmem:[%s1 + $0xc] sm:$0xf]
        %v506 = vunpack.c.l.b16 %v498
        %v507 = vunpack.c.l.b16 %v499
        %v508 = vunpack.c.l.b16 %v500
        %v509 = vunpack.c.l.b16 %v501
        %v510 = vpack.c.b16 %v507, %v506
        %v511 = vpack.c.b16 %v509, %v508
        %v515 = vsel %vm468, %v497, 0
        %517 = vmatprep.subr.bf16.mxu0 0
        %518 = vmatpush1.bf16.msra.mxu0 %v510
        %519 = vmatprep.subr.bf16.mxu0 0
        %520 = vmatpush1.bf16.msra.mxu0 %v511
        %521 = vmatprep.subr.bf16.mxu0 0
        %522 = vmatpush1.bf16.msra.mxu0 0
        %523 = vmatprep.subr.bf16.mxu0 0
        %524 = vmatpush1.bf16.msra.mxu0 0
        %525 = vmatprep.subr.bf16.mxu0 0
        %526 = vmatpush1.bf16.msra.mxu0 0
        %527 = vmatprep.subr.bf16.mxu0 0
        %528 = vmatpush1.bf16.msra.mxu0 0
        %529 = vmatprep.subr.bf16.mxu0 0
        %530 = vmatpush1.bf16.msra.mxu0 0
        %531 = vmatprep.subr.bf16.mxu0 0
        %532 = vmatpush1.bf16.msra.mxu0 0
        %533 = vmatprep.subr.bf16.mxu0 0
        %534 = vmatpush1.bf16.msra.mxu0 0
        %535 = vmatprep.subr.bf16.mxu0 0
        %536 = vmatpush1.bf16.msra.mxu0 0
        %537 = vmatprep.subr.bf16.mxu0 0
        %538 = vmatpush1.bf16.msra.mxu0 0
        %539 = vmatprep.subr.bf16.mxu0 0
        %540 = vmatpush1.bf16.msra.mxu0 0
        %541 = vmatprep.subr.bf16.mxu0 0
        %542 = vmatpush1.bf16.msra.mxu0 0
        %543 = vmatprep.subr.bf16.mxu0 0
        %544 = vmatpush1.bf16.msra.mxu0 0
        %545 = vmatprep.subr.bf16.mxu0 0
        %546 = vmatpush1.bf16.msra.mxu0 0
        %547 = vmatprep.subr.bf16.mxu0 0
        %548 = vmatpush1.bf16.msra.mxu0 0
        %549 = vmatprep.mubr.bf16.mxu0 0
        %550 = vmatmul.mubr.bf16.gmra.mrb[0].mxu0 %v515
        %v551 = vpop.f32.mrb[0].mxu0
        %v552 = vadd.f32 0.0, %v551
        %v553 = vpop.f32.mrb[0].mxu0
        %v554 = vpop.f32.mrb[0].mxu0
        %v555 = vpop.f32.mrb[0].mxu0
        %556 = vdwg.mxu0
        %v557 = vlaneseq
        %v558 = vshrl.u32 %v557, 7
        %v559 = vlaneseq
        %v560 = vand.u32 %v559, 127
        %vm561 = vcmp.le.s32.totalorder %v560, %v558
        %563 = vrot.lane.b32.xlu0 %v552, 120
        %v564 = vpop.permute.xlu0 %563
        %566 = vrot.lane.b32.xlu0 %v552, 112
        %v567 = vpop.permute.xlu0 %566
        %569 = vrot.lane.b32.xlu0 %v552, 104
        %v570 = vpop.permute.xlu0 %569
        %v572 = vcombine.low %v552, %v567
        %v573 = vcombine.high %v552, %v567
        %v575 = vunpack.c.l.s4 1983009808
        %v576 = vunpack.c.0.s8 %v575
        %v577 = vlaneseq
        %v578 = vshrl.u32 %v577, 7
        %v579 = vsub.s32 %v576, %v578
        %v580 = vrot.slane %v572, %v579
        %v582 = vunpack.c.l.s4 1983009808
        %v583 = vunpack.c.0.s8 %v582
        %v584 = vlaneseq
        %v585 = vshrl.u32 %v584, 7
        %v586 = vsub.s32 %v583, %v585
        %v587 = vrot.slane %v573, %v586
        %v588 = vcombine.low %v564, %v570
        %v589 = vcombine.high %v564, %v570
        %v591 = vunpack.c.l.s4 1983009808
        %v592 = vunpack.c.0.s8 %v591
        %v593 = vlaneseq
        %v594 = vshrl.u32 %v593, 7
        %v595 = vsub.s32 %v592, %v594
        %v596 = vrot.slane %v588, %v595
        %v598 = vunpack.c.l.s4 1983009808
        %v599 = vunpack.c.0.s8 %v598
        %v600 = vlaneseq
        %v601 = vshrl.u32 %v600, 7
        %v602 = vsub.s32 %v599, %v601
        %v603 = vrot.slane %v589, %v602
        %v604 = vcombine.low %v580, %v596
        %v605 = vcombine.high %v580, %v596
        %v607 = vunpack.c.l.s4 1934713408
        %v608 = vunpack.c.0.s8 %v607
        %v609 = vlaneseq
        %v610 = vshrl.u32 %v609, 7
        %v611 = vsub.s32 %v608, %v610
        %v612 = vrot.slane %v604, %v611
        %v614 = vunpack.c.l.s4 1934713408
        %v615 = vunpack.c.0.s8 %v614
        %v616 = vlaneseq
        %v617 = vshrl.u32 %v616, 7
        %v618 = vsub.s32 %v615, %v617
        %v619 = vrot.slane %v605, %v618
        %v620 = vcombine.low %v587, %v603
        %v621 = vcombine.high %v587, %v603
        %v623 = vunpack.c.l.s4 1934713408
        %v624 = vunpack.c.0.s8 %v623
        %v625 = vlaneseq
        %v626 = vshrl.u32 %v625, 7
        %v627 = vsub.s32 %v624, %v626
        %v628 = vrot.slane %v620, %v627
        %v630 = vunpack.c.l.s4 1934713408
        %v631 = vunpack.c.0.s8 %v630
        %v632 = vlaneseq
        %v633 = vshrl.u32 %v632, 7
        %v634 = vsub.s32 %v631, %v633
        %v635 = vrot.slane %v621, %v634
        %v636 = vcombine.high %v612, 0.0
        %v637 = vcombine.high %v619, 0.0
        %v638 = vcombine.high %v628, 0.0
        %v639 = vcombine.high %v635, 0.0
        %640 = vrot.lane.b32.xlu0 %v552, 96
        %v641 = vpop.permute.xlu0 %640
        %642 = vrot.lane.b32.xlu0 %v564, 96
        %v643 = vpop.permute.xlu0 %642
        %644 = vrot.lane.b32.xlu0 %v567, 96
        %v645 = vpop.permute.xlu0 %644
        %646 = vrot.lane.b32.xlu0 %v570, 96
        %v647 = vpop.permute.xlu0 %646
        %v652 = vcombine.low %v641, %v645
        %v653 = vcombine.high %v641, %v645
        %v655 = vunpack.c.l.s4 1983009808
        %v656 = vunpack.c.0.s8 %v655
        %v657 = vlaneseq
        %v658 = vshrl.u32 %v657, 7
        %v659 = vsub.s32 %v656, %v658
        %v660 = vrot.slane %v652, %v659
        %v662 = vunpack.c.l.s4 1983009808
        %v663 = vunpack.c.0.s8 %v662
        %v664 = vlaneseq
        %v665 = vshrl.u32 %v664, 7
        %v666 = vsub.s32 %v663, %v665
        %v667 = vrot.slane %v653, %v666
        %v668 = vcombine.low %v643, %v647
        %v669 = vcombine.high %v643, %v647
        %v671 = vunpack.c.l.s4 1983009808
        %v672 = vunpack.c.0.s8 %v671
        %v673 = vlaneseq
        %v674 = vshrl.u32 %v673, 7
        %v675 = vsub.s32 %v672, %v674
        %v676 = vrot.slane %v668, %v675
        %v678 = vunpack.c.l.s4 1983009808
        %v679 = vunpack.c.0.s8 %v678
        %v680 = vlaneseq
        %v681 = vshrl.u32 %v680, 7
        %v682 = vsub.s32 %v679, %v681
        %v683 = vrot.slane %v669, %v682
        %v684 = vcombine.low %v660, %v676
        %v685 = vcombine.high %v660, %v676
        %v687 = vunpack.c.l.s4 1934713408
        %v688 = vunpack.c.0.s8 %v687
        %v689 = vlaneseq
        %v690 = vshrl.u32 %v689, 7
        %v691 = vsub.s32 %v688, %v690
        %v692 = vrot.slane %v684, %v691
        %v694 = vunpack.c.l.s4 1934713408
        %v695 = vunpack.c.0.s8 %v694
        %v696 = vlaneseq
        %v697 = vshrl.u32 %v696, 7
        %v698 = vsub.s32 %v695, %v697
        %v699 = vrot.slane %v685, %v698
        %v700 = vcombine.low %v667, %v683
        %v701 = vcombine.high %v667, %v683
        %v703 = vunpack.c.l.s4 1934713408
        %v704 = vunpack.c.0.s8 %v703
        %v705 = vlaneseq
        %v706 = vshrl.u32 %v705, 7
        %v707 = vsub.s32 %v704, %v706
        %v708 = vrot.slane %v700, %v707
        %v710 = vunpack.c.l.s4 1934713408
        %v711 = vunpack.c.0.s8 %v710
        %v712 = vlaneseq
        %v713 = vshrl.u32 %v712, 7
        %v714 = vsub.s32 %v711, %v713
        %v715 = vrot.slane %v701, %v714
        %v716 = vcombine.high %v692, 0.0
        %v717 = vcombine.high %v699, 0.0
        %v718 = vcombine.high %v708, 0.0
        %v719 = vcombine.high %v715, 0.0
        %720 = vrot.lane.b32.xlu0 %v552, 64
        %v721 = vpop.permute.xlu0 %720
        %722 = vrot.lane.b32.xlu0 %v564, 64
        %v723 = vpop.permute.xlu0 %722
        %724 = vrot.lane.b32.xlu0 %v567, 64
        %v725 = vpop.permute.xlu0 %724
        %726 = vrot.lane.b32.xlu0 %v570, 64
        %v727 = vpop.permute.xlu0 %726
        %v732 = vcombine.low %v721, %v725
        %v733 = vcombine.high %v721, %v725
        %v735 = vunpack.c.l.s4 1983009808
        %v736 = vunpack.c.0.s8 %v735
        %v737 = vlaneseq
        %v738 = vshrl.u32 %v737, 7
        %v739 = vsub.s32 %v736, %v738
        %v740 = vrot.slane %v732, %v739
        %v742 = vunpack.c.l.s4 1983009808
        %v743 = vunpack.c.0.s8 %v742
        %v744 = vlaneseq
        %v745 = vshrl.u32 %v744, 7
        %v746 = vsub.s32 %v743, %v745
        %v747 = vrot.slane %v733, %v746
        %v748 = vcombine.low %v723, %v727
        %v749 = vcombine.high %v723, %v727
        %v751 = vunpack.c.l.s4 1983009808
        %v752 = vunpack.c.0.s8 %v751
        %v753 = vlaneseq
        %v754 = vshrl.u32 %v753, 7
        %v755 = vsub.s32 %v752, %v754
        %v756 = vrot.slane %v748, %v755
        %v758 = vunpack.c.l.s4 1983009808
        %v759 = vunpack.c.0.s8 %v758
        %v760 = vlaneseq
        %v761 = vshrl.u32 %v760, 7
        %v762 = vsub.s32 %v759, %v761
        %v763 = vrot.slane %v749, %v762
        %v764 = vcombine.low %v740, %v756
        %v765 = vcombine.high %v740, %v756
        %v767 = vunpack.c.l.s4 1934713408
        %v768 = vunpack.c.0.s8 %v767
        %v769 = vlaneseq
        %v770 = vshrl.u32 %v769, 7
        %v771 = vsub.s32 %v768, %v770
        %v772 = vrot.slane %v764, %v771
        %v774 = vunpack.c.l.s4 1934713408
        %v775 = vunpack.c.0.s8 %v774
        %v776 = vlaneseq
        %v777 = vshrl.u32 %v776, 7
        %v778 = vsub.s32 %v775, %v777
        %v779 = vrot.slane %v765, %v778
        %v780 = vcombine.low %v747, %v763
        %v781 = vcombine.high %v747, %v763
        %v783 = vunpack.c.l.s4 1934713408
        %v784 = vunpack.c.0.s8 %v783
        %v785 = vlaneseq
        %v786 = vshrl.u32 %v785, 7
        %v787 = vsub.s32 %v784, %v786
        %v788 = vrot.slane %v780, %v787
        %v790 = vunpack.c.l.s4 1934713408
        %v791 = vunpack.c.0.s8 %v790
        %v792 = vlaneseq
        %v793 = vshrl.u32 %v792, 7
        %v794 = vsub.s32 %v791, %v793
        %v795 = vrot.slane %v781, %v794
        %v796 = vcombine.high %v772, 0.0
        %v797 = vcombine.high %v779, 0.0
        %v798 = vcombine.high %v788, 0.0
        %v799 = vcombine.high %v795, 0.0
        %v800 = vcombine.low %v612, %v619
        %v802 = vunpack.c.l.s4 1983009808
        %v803 = vunpack.c.0.s8 %v802
        %v804 = vlaneseq
        %v805 = vshrl.u32 %v804, 7
        %v806 = vsub.s32 %v803, %v805
        %v807 = vrot.slane %v800, %v806
        %v808 = vcombine.low %v636, %v637
        %v810 = vunpack.c.l.s4 1983009808
        %v811 = vunpack.c.0.s8 %v810
        %v812 = vlaneseq
        %v813 = vshrl.u32 %v812, 7
        %v814 = vsub.s32 %v811, %v813
        %v815 = vrot.slane %v808, %v814
        %v816 = vcombine.low %v628, %v635
        %v818 = vunpack.c.l.s4 1983009808
        %v819 = vunpack.c.0.s8 %v818
        %v820 = vlaneseq
        %v821 = vshrl.u32 %v820, 7
        %v822 = vsub.s32 %v819, %v821
        %v823 = vrot.slane %v816, %v822
        %v824 = vcombine.low %v638, %v639
        %v826 = vunpack.c.l.s4 1983009808
        %v827 = vunpack.c.0.s8 %v826
        %v828 = vlaneseq
        %v829 = vshrl.u32 %v828, 7
        %v830 = vsub.s32 %v827, %v829
        %v831 = vrot.slane %v824, %v830
        %v832 = vcombine.low %v807, %v815
        %v833 = vcombine.high %v807, %v815
        %v835 = vunpack.c.l.s4 1934713408
        %v836 = vunpack.c.0.s8 %v835
        %v837 = vlaneseq
        %v838 = vshrl.u32 %v837, 7
        %v839 = vsub.s32 %v836, %v838
        %v840 = vrot.slane %v832, %v839
        %v842 = vunpack.c.l.s4 1934713408
        %v843 = vunpack.c.0.s8 %v842
        %v844 = vlaneseq
        %v845 = vshrl.u32 %v844, 7
        %v846 = vsub.s32 %v843, %v845
        %v847 = vrot.slane %v833, %v846
        %v848 = vcombine.low %v823, %v831
        %v849 = vcombine.high %v823, %v831
        %v851 = vunpack.c.l.s4 1934713408
        %v852 = vunpack.c.0.s8 %v851
        %v853 = vlaneseq
        %v854 = vshrl.u32 %v853, 7
        %v855 = vsub.s32 %v852, %v854
        %v856 = vrot.slane %v848, %v855
        %v858 = vunpack.c.l.s4 1934713408
        %v859 = vunpack.c.0.s8 %v858
        %v860 = vlaneseq
        %v861 = vshrl.u32 %v860, 7
        %v862 = vsub.s32 %v859, %v861
        %v863 = vrot.slane %v849, %v862
        %v864 = vcombine.low %v840, %v856
        %v865 = vcombine.high %v840, %v856
        %v866 = vcombine.low %v847, %v863
        %v867 = vcombine.high %v847, %v863
        %v868 = vcombine.low %v692, %v699
        %v870 = vunpack.c.l.s4 1983009808
        %v871 = vunpack.c.0.s8 %v870
        %v872 = vlaneseq
        %v873 = vshrl.u32 %v872, 7
        %v874 = vsub.s32 %v871, %v873
        %v875 = vrot.slane %v868, %v874
        %v876 = vcombine.low %v716, %v717
        %v878 = vunpack.c.l.s4 1983009808
        %v879 = vunpack.c.0.s8 %v878
        %v880 = vlaneseq
        %v881 = vshrl.u32 %v880, 7
        %v882 = vsub.s32 %v879, %v881
        %v883 = vrot.slane %v876, %v882
        %v884 = vcombine.low %v708, %v715
        %v886 = vunpack.c.l.s4 1983009808
        %v887 = vunpack.c.0.s8 %v886
        %v888 = vlaneseq
        %v889 = vshrl.u32 %v888, 7
        %v890 = vsub.s32 %v887, %v889
        %v891 = vrot.slane %v884, %v890
        %v892 = vcombine.low %v718, %v719
        %v894 = vunpack.c.l.s4 1983009808
        %v895 = vunpack.c.0.s8 %v894
        %v896 = vlaneseq
        %v897 = vshrl.u32 %v896, 7
        %v898 = vsub.s32 %v895, %v897
        %v899 = vrot.slane %v892, %v898
        %v900 = vcombine.low %v875, %v883
        %v901 = vcombine.high %v875, %v883
        %v903 = vunpack.c.l.s4 1934713408
        %v904 = vunpack.c.0.s8 %v903
        %v905 = vlaneseq
        %v906 = vshrl.u32 %v905, 7
        %v907 = vsub.s32 %v904, %v906
        %v908 = vrot.slane %v900, %v907
        %v910 = vunpack.c.l.s4 1934713408
        %v911 = vunpack.c.0.s8 %v910
        %v912 = vlaneseq
        %v913 = vshrl.u32 %v912, 7
        %v914 = vsub.s32 %v911, %v913
        %v915 = vrot.slane %v901, %v914
        %v916 = vcombine.low %v891, %v899
        %v917 = vcombine.high %v891, %v899
        %v919 = vunpack.c.l.s4 1934713408
        %v920 = vunpack.c.0.s8 %v919
        %v921 = vlaneseq
        %v922 = vshrl.u32 %v921, 7
        %v923 = vsub.s32 %v920, %v922
        %v924 = vrot.slane %v916, %v923
        %v926 = vunpack.c.l.s4 1934713408
        %v927 = vunpack.c.0.s8 %v926
        %v928 = vlaneseq
        %v929 = vshrl.u32 %v928, 7
        %v930 = vsub.s32 %v927, %v929
        %v931 = vrot.slane %v917, %v930
        %v932 = vcombine.low %v908, %v924
        %v933 = vcombine.high %v908, %v924
        %v934 = vcombine.low %v915, %v931
        %v935 = vcombine.high %v915, %v931
        %v936 = vcombine.low %v772, %v779
        %v938 = vunpack.c.l.s4 1983009808
        %v939 = vunpack.c.0.s8 %v938
        %v940 = vlaneseq
        %v941 = vshrl.u32 %v940, 7
        %v942 = vsub.s32 %v939, %v941
        %v943 = vrot.slane %v936, %v942
        %v944 = vcombine.low %v796, %v797
        %v946 = vunpack.c.l.s4 1983009808
        %v947 = vunpack.c.0.s8 %v946
        %v948 = vlaneseq
        %v949 = vshrl.u32 %v948, 7
        %v950 = vsub.s32 %v947, %v949
        %v951 = vrot.slane %v944, %v950
        %v952 = vcombine.low %v788, %v795
        %v954 = vunpack.c.l.s4 1983009808
        %v955 = vunpack.c.0.s8 %v954
        %v956 = vlaneseq
        %v957 = vshrl.u32 %v956, 7
        %v958 = vsub.s32 %v955, %v957
        %v959 = vrot.slane %v952, %v958
        %v960 = vcombine.low %v798, %v799
        %v962 = vunpack.c.l.s4 1983009808
        %v963 = vunpack.c.0.s8 %v962
        %v964 = vlaneseq
        %v965 = vshrl.u32 %v964, 7
        %v966 = vsub.s32 %v963, %v965
        %v967 = vrot.slane %v960, %v966
        %v968 = vcombine.low %v943, %v951
        %v969 = vcombine.high %v943, %v951
        %v971 = vunpack.c.l.s4 1934713408
        %v972 = vunpack.c.0.s8 %v971
        %v973 = vlaneseq
        %v974 = vshrl.u32 %v973, 7
        %v975 = vsub.s32 %v972, %v974
        %v976 = vrot.slane %v968, %v975
        %v978 = vunpack.c.l.s4 1934713408
        %v979 = vunpack.c.0.s8 %v978
        %v980 = vlaneseq
        %v981 = vshrl.u32 %v980, 7
        %v982 = vsub.s32 %v979, %v981
        %v983 = vrot.slane %v969, %v982
        %v984 = vcombine.low %v959, %v967
        %v985 = vcombine.high %v959, %v967
        %v987 = vunpack.c.l.s4 1934713408
        %v988 = vunpack.c.0.s8 %v987
        %v989 = vlaneseq
        %v990 = vshrl.u32 %v989, 7
        %v991 = vsub.s32 %v988, %v990
        %v992 = vrot.slane %v984, %v991
        %v994 = vunpack.c.l.s4 1934713408
        %v995 = vunpack.c.0.s8 %v994
        %v996 = vlaneseq
        %v997 = vshrl.u32 %v996, 7
        %v998 = vsub.s32 %v995, %v997
        %v999 = vrot.slane %v985, %v998
        %v1000 = vcombine.low %v976, %v992
        %v1001 = vcombine.high %v976, %v992
        %v1002 = vcombine.low %v983, %v999
        %v1003 = vcombine.high %v983, %v999
        %v1004 = vpack.c.bf16 %v864, %v864
        %v1005 = vpack.c.bf16 %v865, %v865
        %v1006 = vpack.c.bf16 %v866, %v866
        %v1007 = vpack.c.bf16 %v867, %v867
        %v1008 = vpack.c.bf16 %v932, %v932
        %v1009 = vpack.c.bf16 %v933, %v933
        %v1010 = vpack.c.bf16 %v934, %v934
        %v1011 = vpack.c.bf16 %v935, %v935
        %vm1012 = vcmask 64512
        %v1014 = vsel %vm1012, %v1004, 0
        %v1017 = vsel %vm1012, %v1008, 0
        %1019 = vmatprep.subr.bf16.mxu0 0
        %1020 = vmatpush1.bf16.xpose.msra.mxu0 %v1017
        %1021 = vmatprep.subr.bf16.mxu0 0
        %1022 = vmatpush1.bf16.xpose.msra.mxu0 0
        %1023 = vmatprep.subr.bf16.mxu0 0
        %1024 = vmatpush1.bf16.xpose.msra.mxu0 0
        %1025 = vmatprep.subr.bf16.mxu0 0
        %1026 = vmatpush1.bf16.xpose.msra.mxu0 0
        %1027 = vmatprep.subr.bf16.mxu0 0
        %1028 = vmatpush1.bf16.xpose.msra.mxu0 0
        %1029 = vmatprep.subr.bf16.mxu0 0
        %1030 = vmatpush1.bf16.xpose.msra.mxu0 0
        %1031 = vmatprep.subr.bf16.mxu0 0
        %1032 = vmatpush1.bf16.xpose.msra.mxu0 0
        %1033 = vmatprep.subr.bf16.mxu0 0
        %1034 = vmatpush1.bf16.xpose.msra.mxu0 0
        %1035 = vmatprep.subr.bf16.mxu0 0
        %1036 = vmatpush1.bf16.xpose.msra.mxu0 0
        %1037 = vmatprep.subr.bf16.mxu0 0
        %1038 = vmatpush1.bf16.xpose.msra.mxu0 0
        %1039 = vmatprep.subr.bf16.mxu0 0
        %1040 = vmatpush1.bf16.xpose.msra.mxu0 0
        %1041 = vmatprep.subr.bf16.mxu0 0
        %1042 = vmatpush1.bf16.xpose.msra.mxu0 0
        %1043 = vmatprep.subr.bf16.mxu0 0
        %1044 = vmatpush1.bf16.xpose.msra.mxu0 0
        %1045 = vmatprep.subr.bf16.mxu0 0
        %1046 = vmatpush1.bf16.xpose.msra.mxu0 0
        %1047 = vmatprep.subr.bf16.mxu0 0
        %1048 = vmatpush1.bf16.xpose.msra.mxu0 0
        %1049 = vmatprep.subr.bf16.mxu0 0
        %1050 = vmatpush1.bf16.xpose.msra.mxu0 0
        %1051 = vmatprep.mubr.bf16.mxu0 0
        %1052 = vmatmul.mubr.bf16.gmra.mrb[0].mxu0 %v1014
        %v1053 = vpop.f32.mrb[0].mxu0
        %v1054 = vadd.f32 0.0, %v1053
        %v1055 = vpop.f32.mrb[0].mxu0
        %v1056 = vpop.f32.mrb[0].mxu0
        %v1057 = vpop.f32.mrb[0].mxu0
        %1058 = vdwg.mxu0
        %v1060 = vsel %vm1012, %v1005, 0
        %v1063 = vsel %vm1012, %v1009, 0
        %1065 = vmatprep.subr.bf16.mxu0 0
        %1066 = vmatpush1.bf16.xpose.msra.mxu0 %v1063
        %1067 = vmatprep.subr.bf16.mxu0 0
        %1068 = vmatpush1.bf16.xpose.msra.mxu0 0
        %1069 = vmatprep.subr.bf16.mxu0 0
        %1070 = vmatpush1.bf16.xpose.msra.mxu0 0
        %1071 = vmatprep.subr.bf16.mxu0 0
        %1072 = vmatpush1.bf16.xpose.msra.mxu0 0
        %1073 = vmatprep.subr.bf16.mxu0 0
        %1074 = vmatpush1.bf16.xpose.msra.mxu0 0
        %1075 = vmatprep.subr.bf16.mxu0 0
        %1076 = vmatpush1.bf16.xpose.msra.mxu0 0
        %1077 = vmatprep.subr.bf16.mxu0 0
        %1078 = vmatpush1.bf16.xpose.msra.mxu0 0
        %1079 = vmatprep.subr.bf16.mxu0 0
        %1080 = vmatpush1.bf16.xpose.msra.mxu0 0
        %1081 = vmatprep.subr.bf16.mxu0 0
        %1082 = vmatpush1.bf16.xpose.msra.mxu0 0
        %1083 = vmatprep.subr.bf16.mxu0 0
        %1084 = vmatpush1.bf16.xpose.msra.mxu0 0
        %1085 = vmatprep.subr.bf16.mxu0 0
        %1086 = vmatpush1.bf16.xpose.msra.mxu0 0
        %1087 = vmatprep.subr.bf16.mxu0 0
        %1088 = vmatpush1.bf16.xpose.msra.mxu0 0
        %1089 = vmatprep.subr.bf16.mxu0 0
        %1090 = vmatpush1.bf16.xpose.msra.mxu0 0
        %1091 = vmatprep.subr.bf16.mxu0 0
        %1092 = vmatpush1.bf16.xpose.msra.mxu0 0
        %1093 = vmatprep.subr.bf16.mxu0 0
        %1094 = vmatpush1.bf16.xpose.msra.mxu0 0
        %1095 = vmatprep.subr.bf16.mxu0 0
        %1096 = vmatpush1.bf16.xpose.msra.mxu0 0
        %1097 = vmatprep.mubr.bf16.mxu0 0
        %1098 = vmatmul.mubr.bf16.gmra.mrb[0].mxu0 %v1060
        %v1099 = vpop.f32.mrb[0].mxu0
        %v1100 = vadd.f32 0.0, %v1099
        %v1101 = vpop.f32.mrb[0].mxu0
        %v1102 = vpop.f32.mrb[0].mxu0
        %v1103 = vpop.f32.mrb[0].mxu0
        %1104 = vdwg.mxu0
        %v1106 = vsel %vm1012, %v1006, 0
        %v1109 = vsel %vm1012, %v1010, 0
        %1111 = vmatprep.subr.bf16.mxu0 0
        %1112 = vmatpush1.bf16.xpose.msra.mxu0 %v1109
        %1113 = vmatprep.subr.bf16.mxu0 0
        %1114 = vmatpush1.bf16.xpose.msra.mxu0 0
        %1115 = vmatprep.subr.bf16.mxu0 0
        %1116 = vmatpush1.bf16.xpose.msra.mxu0 0
        %1117 = vmatprep.subr.bf16.mxu0 0
        %1118 = vmatpush1.bf16.xpose.msra.mxu0 0
        %1119 = vmatprep.subr.bf16.mxu0 0
        %1120 = vmatpush1.bf16.xpose.msra.mxu0 0
        %1121 = vmatprep.subr.bf16.mxu0 0
        %1122 = vmatpush1.bf16.xpose.msra.mxu0 0
        %1123 = vmatprep.subr.bf16.mxu0 0
        %1124 = vmatpush1.bf16.xpose.msra.mxu0 0
        %1125 = vmatprep.subr.bf16.mxu0 0
        %1126 = vmatpush1.bf16.xpose.msra.mxu0 0
        %1127 = vmatprep.subr.bf16.mxu0 0
        %1128 = vmatpush1.bf16.xpose.msra.mxu0 0
        %1129 = vmatprep.subr.bf16.mxu0 0
        %1130 = vmatpush1.bf16.xpose.msra.mxu0 0
        %1131 = vmatprep.subr.bf16.mxu0 0
        %1132 = vmatpush1.bf16.xpose.msra.mxu0 0
        %1133 = vmatprep.subr.bf16.mxu0 0
        %1134 = vmatpush1.bf16.xpose.msra.mxu0 0
        %1135 = vmatprep.subr.bf16.mxu0 0
        %1136 = vmatpush1.bf16.xpose.msra.mxu0 0
        %1137 = vmatprep.subr.bf16.mxu0 0
        %1138 = vmatpush1.bf16.xpose.msra.mxu0 0
        %1139 = vmatprep.subr.bf16.mxu0 0
        %1140 = vmatpush1.bf16.xpose.msra.mxu0 0
        %1141 = vmatprep.subr.bf16.mxu0 0
        %1142 = vmatpush1.bf16.xpose.msra.mxu0 0
        %1143 = vmatprep.mubr.bf16.mxu0 0
        %1144 = vmatmul.mubr.bf16.gmra.mrb[0].mxu0 %v1106
        %v1145 = vpop.f32.mrb[0].mxu0
        %v1146 = vadd.f32 0.0, %v1145
        %v1147 = vpop.f32.mrb[0].mxu0
        %v1148 = vpop.f32.mrb[0].mxu0
        %v1149 = vpop.f32.mrb[0].mxu0
        %1150 = vdwg.mxu0
        %v1152 = vsel %vm1012, %v1007, 0
        %v1155 = vsel %vm1012, %v1011, 0
        %1157 = vmatprep.subr.bf16.mxu0 0
        %1158 = vmatpush1.bf16.xpose.msra.mxu0 %v1155
        %1159 = vmatprep.subr.bf16.mxu0 0
        %1160 = vmatpush1.bf16.xpose.msra.mxu0 0
        %1161 = vmatprep.subr.bf16.mxu0 0
        %1162 = vmatpush1.bf16.xpose.msra.mxu0 0
        %1163 = vmatprep.subr.bf16.mxu0 0
        %1164 = vmatpush1.bf16.xpose.msra.mxu0 0
        %1165 = vmatprep.subr.bf16.mxu0 0
        %1166 = vmatpush1.bf16.xpose.msra.mxu0 0
        %1167 = vmatprep.subr.bf16.mxu0 0
        %1168 = vmatpush1.bf16.xpose.msra.mxu0 0
        %1169 = vmatprep.subr.bf16.mxu0 0
        %1170 = vmatpush1.bf16.xpose.msra.mxu0 0
        %1171 = vmatprep.subr.bf16.mxu0 0
        %1172 = vmatpush1.bf16.xpose.msra.mxu0 0
        %1173 = vmatprep.subr.bf16.mxu0 0
        %1174 = vmatpush1.bf16.xpose.msra.mxu0 0
        %1175 = vmatprep.subr.bf16.mxu0 0
        %1176 = vmatpush1.bf16.xpose.msra.mxu0 0
        %1177 = vmatprep.subr.bf16.mxu0 0
        %1178 = vmatpush1.bf16.xpose.msra.mxu0 0
        %1179 = vmatprep.subr.bf16.mxu0 0
        %1180 = vmatpush1.bf16.xpose.msra.mxu0 0
        %1181 = vmatprep.subr.bf16.mxu0 0
        %1182 = vmatpush1.bf16.xpose.msra.mxu0 0
        %1183 = vmatprep.subr.bf16.mxu0 0
        %1184 = vmatpush1.bf16.xpose.msra.mxu0 0
        %1185 = vmatprep.subr.bf16.mxu0 0
        %1186 = vmatpush1.bf16.xpose.msra.mxu0 0
        %1187 = vmatprep.subr.bf16.mxu0 0
        %1188 = vmatpush1.bf16.xpose.msra.mxu0 0
        %1189 = vmatprep.mubr.bf16.mxu0 0
        %1190 = vmatmul.mubr.bf16.gmra.mrb[0].mxu0 %v1152
        %v1191 = vpop.f32.mrb[0].mxu0
        %v1192 = vadd.f32 0.0, %v1191
        %v1193 = vpop.f32.mrb[0].mxu0
        %v1194 = vpop.f32.mrb[0].mxu0
        %v1195 = vpop.f32.mrb[0].mxu0
        %1196 = vdwg.mxu0
        %v1197 = vmul.f32 %v1054, 0.17677669
        %v1198 = vmul.f32 %v1100, 0.17677669
        %v1199 = vmul.f32 %v1146, 0.17677669
        %v1200 = vmul.f32 %v1192, 0.17677669
        %v1201 = vsel %vm561, 1, 0
        %vm1202 = vcmp.eq.s32.totalorder %v1201, 1
        %v1203 = vsel %vm1202, %v1197, -1e+30
        %v1204 = vsel %vm1202, %v1198, -1e+30
        %v1205 = vsel %vm1202, %v1199, -1e+30
        %v1206 = vsel %vm1202, %v1200, -1e+30
        %v1207 = vsel %vm1012, %v1203, -inf
        %1208 = vmax.xlane.f32.xlu0 %v1207
        %v1209 = vpop.xlane.xlu0 %1208
        %v1210 = vsel %vm1012, %v1204, -inf
        %1211 = vmax.xlane.f32.xlu0 %v1210
        %v1212 = vpop.xlane.xlu0 %1211
        %v1213 = vsel %vm1012, %v1205, -inf
        %1214 = vmax.xlane.f32.xlu0 %v1213
        %v1215 = vpop.xlane.xlu0 %1214
        %v1216 = vsel %vm1012, %v1206, -inf
        %1217 = vmax.xlane.f32.xlu0 %v1216
        %v1218 = vpop.xlane.xlu0 %1217
        %v1219 = vsub.f32 %v1203, %v1209
        %v1220 = vsub.f32 %v1204, %v1212
        %v1221 = vsub.f32 %v1205, %v1215
        %v1222 = vsub.f32 %v1206, %v1218
        %v1223 = vmul.f32 %v1219, 1.442695
        %v1224 = vpow.pop %v1223
        %v1225 = vmul.f32 %v1220, 1.442695
        %v1226 = vpow.pop %v1225
        %v1227 = vmul.f32 %v1221, 1.442695
        %v1228 = vpow.pop %v1227
        %v1229 = vmul.f32 %v1222, 1.442695
        %v1230 = vpow.pop %v1229
        %v1231 = vsel %vm1012, %v1224, 0.0
        %1232 = vadd.xlane.f32.xlu0 %v1231
        %v1233 = vpop.xlane.xlu0 %1232
        %v1234 = vsel %vm1012, %v1226, 0.0
        %1235 = vadd.xlane.f32.xlu0 %v1234
        %v1236 = vpop.xlane.xlu0 %1235
        %v1237 = vsel %vm1012, %v1228, 0.0
        %1238 = vadd.xlane.f32.xlu0 %v1237
        %v1239 = vpop.xlane.xlu0 %1238
        %v1240 = vsel %vm1012, %v1230, 0.0
        %1241 = vadd.xlane.f32.xlu0 %v1240
        %v1242 = vpop.xlane.xlu0 %1241
        %v1243 = vrcp.pop %v1233
        %v1244 = vrcp.pop %v1236
        %v1245 = vrcp.pop %v1239
        %v1246 = vrcp.pop %v1242
        %v1247 = vmul.f32 %v1224, %v1243
        %v1248 = vmul.f32 %v1226, %v1244
        %v1249 = vmul.f32 %v1228, %v1245
        %v1250 = vmul.f32 %v1230, %v1246
        %v1251 = vpack.c.bf16 %v1247, %v1247
        %v1252 = vpack.c.bf16 %v1248, %v1248
        %v1253 = vpack.c.bf16 %v1249, %v1249
        %v1254 = vpack.c.bf16 %v1250, %v1250
        %v1255 = vpack.c.bf16 %v1000, %v1000
        %v1256 = vpack.c.bf16 %v1001, %v1001
        %v1257 = vpack.c.bf16 %v1002, %v1002
        %v1258 = vpack.c.bf16 %v1003, %v1003
        %v1260 = vsel %vm1012, %v1251, 0
        %vm1262 = vcmask 1043456
        %v1264 = vsel %vm1262, %v1255, 0
        %1266 = vmatprep.subr.bf16.mxu0 0
        %1267 = vmatpush1.bf16.msra.mxu0 %v1264
        %1268 = vmatprep.subr.bf16.mxu0 0
        %1269 = vmatpush1.bf16.msra.mxu0 0
        %1270 = vmatprep.subr.bf16.mxu0 0
        %1271 = vmatpush1.bf16.msra.mxu0 0
        %1272 = vmatprep.subr.bf16.mxu0 0
        %1273 = vmatpush1.bf16.msra.mxu0 0
        %1274 = vmatprep.subr.bf16.mxu0 0
        %1275 = vmatpush1.bf16.msra.mxu0 0
        %1276 = vmatprep.subr.bf16.mxu0 0
        %1277 = vmatpush1.bf16.msra.mxu0 0
        %1278 = vmatprep.subr.bf16.mxu0 0
        %1279 = vmatpush1.bf16.msra.mxu0 0
        %1280 = vmatprep.subr.bf16.mxu0 0
        %1281 = vmatpush1.bf16.msra.mxu0 0
        %1282 = vmatprep.subr.bf16.mxu0 0
        %1283 = vmatpush1.bf16.msra.mxu0 0
        %1284 = vmatprep.subr.bf16.mxu0 0
        %1285 = vmatpush1.bf16.msra.mxu0 0
        %1286 = vmatprep.subr.bf16.mxu0 0
        %1287 = vmatpush1.bf16.msra.mxu0 0
        %1288 = vmatprep.subr.bf16.mxu0 0
        %1289 = vmatpush1.bf16.msra.mxu0 0
        %1290 = vmatprep.subr.bf16.mxu0 0
        %1291 = vmatpush1.bf16.msra.mxu0 0
        %1292 = vmatprep.subr.bf16.mxu0 0
        %1293 = vmatpush1.bf16.msra.mxu0 0
        %1294 = vmatprep.subr.bf16.mxu0 0
        %1295 = vmatpush1.bf16.msra.mxu0 0
        %1296 = vmatprep.subr.bf16.mxu0 0
        %1297 = vmatpush1.bf16.msra.mxu0 0
        %1298 = vmatprep.mubr.bf16.mxu0 0
        %1299 = vmatmul.mubr.bf16.gmra.mrb[0].mxu0 %v1260
        %v1300 = vpop.f32.mrb[0].mxu0
        %v1301 = vadd.f32 0.0, %v1300
        %v1302 = vpop.f32.mrb[0].mxu0
        %v1303 = vpop.f32.mrb[0].mxu0
        %v1304 = vpop.f32.mrb[0].mxu0
        %1305 = vdwg.mxu0
        %v1307 = vsel %vm1012, %v1252, 0
        %v1310 = vsel %vm1262, %v1256, 0
        %1312 = vmatprep.subr.bf16.mxu0 0
        %1313 = vmatpush1.bf16.msra.mxu0 %v1310
        %1314 = vmatprep.subr.bf16.mxu0 0
        %1315 = vmatpush1.bf16.msra.mxu0 0
        %1316 = vmatprep.subr.bf16.mxu0 0
        %1317 = vmatpush1.bf16.msra.mxu0 0
        %1318 = vmatprep.subr.bf16.mxu0 0
        %1319 = vmatpush1.bf16.msra.mxu0 0
        %1320 = vmatprep.subr.bf16.mxu0 0
        %1321 = vmatpush1.bf16.msra.mxu0 0
        %1322 = vmatprep.subr.bf16.mxu0 0
        %1323 = vmatpush1.bf16.msra.mxu0 0
        %1324 = vmatprep.subr.bf16.mxu0 0
        %1325 = vmatpush1.bf16.msra.mxu0 0
        %1326 = vmatprep.subr.bf16.mxu0 0
        %1327 = vmatpush1.bf16.msra.mxu0 0
        %1328 = vmatprep.subr.bf16.mxu0 0
        %1329 = vmatpush1.bf16.msra.mxu0 0
        %1330 = vmatprep.subr.bf16.mxu0 0
        %1331 = vmatpush1.bf16.msra.mxu0 0
        %1332 = vmatprep.subr.bf16.mxu0 0
        %1333 = vmatpush1.bf16.msra.mxu0 0
        %1334 = vmatprep.subr.bf16.mxu0 0
        %1335 = vmatpush1.bf16.msra.mxu0 0
        %1336 = vmatprep.subr.bf16.mxu0 0
        %1337 = vmatpush1.bf16.msra.mxu0 0
        %1338 = vmatprep.subr.bf16.mxu0 0
        %1339 = vmatpush1.bf16.msra.mxu0 0
        %1340 = vmatprep.subr.bf16.mxu0 0
        %1341 = vmatpush1.bf16.msra.mxu0 0
        %1342 = vmatprep.subr.bf16.mxu0 0
        %1343 = vmatpush1.bf16.msra.mxu0 0
        %1344 = vmatprep.mubr.bf16.mxu0 0
        %1345 = vmatmul.mubr.bf16.gmra.mrb[0].mxu0 %v1307
        %v1346 = vpop.f32.mrb[0].mxu0
        %v1347 = vadd.f32 0.0, %v1346
        %v1348 = vpop.f32.mrb[0].mxu0
        %v1349 = vpop.f32.mrb[0].mxu0
        %v1350 = vpop.f32.mrb[0].mxu0
        %1351 = vdwg.mxu0
        %v1353 = vsel %vm1012, %v1253, 0
        %v1356 = vsel %vm1262, %v1257, 0
        %1358 = vmatprep.subr.bf16.mxu0 0
        %1359 = vmatpush1.bf16.msra.mxu0 %v1356
        %1360 = vmatprep.subr.bf16.mxu0 0
        %1361 = vmatpush1.bf16.msra.mxu0 0
        %1362 = vmatprep.subr.bf16.mxu0 0
        %1363 = vmatpush1.bf16.msra.mxu0 0
        %1364 = vmatprep.subr.bf16.mxu0 0
        %1365 = vmatpush1.bf16.msra.mxu0 0
        %1366 = vmatprep.subr.bf16.mxu0 0
        %1367 = vmatpush1.bf16.msra.mxu0 0
        %1368 = vmatprep.subr.bf16.mxu0 0
        %1369 = vmatpush1.bf16.msra.mxu0 0
        %1370 = vmatprep.subr.bf16.mxu0 0
        %1371 = vmatpush1.bf16.msra.mxu0 0
        %1372 = vmatprep.subr.bf16.mxu0 0
        %1373 = vmatpush1.bf16.msra.mxu0 0
        %1374 = vmatprep.subr.bf16.mxu0 0
        %1375 = vmatpush1.bf16.msra.mxu0 0
        %1376 = vmatprep.subr.bf16.mxu0 0
        %1377 = vmatpush1.bf16.msra.mxu0 0
        %1378 = vmatprep.subr.bf16.mxu0 0
        %1379 = vmatpush1.bf16.msra.mxu0 0
        %1380 = vmatprep.subr.bf16.mxu0 0
        %1381 = vmatpush1.bf16.msra.mxu0 0
        %1382 = vmatprep.subr.bf16.mxu0 0
        %1383 = vmatpush1.bf16.msra.mxu0 0
        %1384 = vmatprep.subr.bf16.mxu0 0
        %1385 = vmatpush1.bf16.msra.mxu0 0
        %1386 = vmatprep.subr.bf16.mxu0 0
        %1387 = vmatpush1.bf16.msra.mxu0 0
        %1388 = vmatprep.subr.bf16.mxu0 0
        %1389 = vmatpush1.bf16.msra.mxu0 0
        %1390 = vmatprep.mubr.bf16.mxu0 0
        %1391 = vmatmul.mubr.bf16.gmra.mrb[0].mxu0 %v1353
        %v1392 = vpop.f32.mrb[0].mxu0
        %v1393 = vadd.f32 0.0, %v1392
        %v1394 = vpop.f32.mrb[0].mxu0
        %v1395 = vpop.f32.mrb[0].mxu0
        %v1396 = vpop.f32.mrb[0].mxu0
        %1397 = vdwg.mxu0
        %v1399 = vsel %vm1012, %v1254, 0
        %v1402 = vsel %vm1262, %v1258, 0
        %1404 = vmatprep.subr.bf16.mxu0 0
        %1405 = vmatpush1.bf16.msra.mxu0 %v1402
        %1406 = vmatprep.subr.bf16.mxu0 0
        %1407 = vmatpush1.bf16.msra.mxu0 0
        %1408 = vmatprep.subr.bf16.mxu0 0
        %1409 = vmatpush1.bf16.msra.mxu0 0
        %1410 = vmatprep.subr.bf16.mxu0 0
        %1411 = vmatpush1.bf16.msra.mxu0 0
        %1412 = vmatprep.subr.bf16.mxu0 0
        %1413 = vmatpush1.bf16.msra.mxu0 0
        %1414 = vmatprep.subr.bf16.mxu0 0
        %1415 = vmatpush1.bf16.msra.mxu0 0
        %1416 = vmatprep.subr.bf16.mxu0 0
        %1417 = vmatpush1.bf16.msra.mxu0 0
        %1418 = vmatprep.subr.bf16.mxu0 0
        %1419 = vmatpush1.bf16.msra.mxu0 0
        %1420 = vmatprep.subr.bf16.mxu0 0
        %1421 = vmatpush1.bf16.msra.mxu0 0
        %1422 = vmatprep.subr.bf16.mxu0 0
        %1423 = vmatpush1.bf16.msra.mxu0 0
        %1424 = vmatprep.subr.bf16.mxu0 0
        %1425 = vmatpush1.bf16.msra.mxu0 0
        %1426 = vmatprep.subr.bf16.mxu0 0
        %1427 = vmatpush1.bf16.msra.mxu0 0
        %1428 = vmatprep.subr.bf16.mxu0 0
        %1429 = vmatpush1.bf16.msra.mxu0 0
        %1430 = vmatprep.subr.bf16.mxu0 0
        %1431 = vmatpush1.bf16.msra.mxu0 0
        %1432 = vmatprep.subr.bf16.mxu0 0
        %1433 = vmatpush1.bf16.msra.mxu0 0
        %1434 = vmatprep.subr.bf16.mxu0 0
        %1435 = vmatpush1.bf16.msra.mxu0 0
        %1436 = vmatprep.mubr.bf16.mxu0 0
        %1437 = vmatmul.mubr.bf16.gmra.mrb[0].mxu0 %v1399
        %v1438 = vpop.f32.mrb[0].mxu0
        %v1439 = vadd.f32 0.0, %v1438
        %v1440 = vpop.f32.mrb[0].mxu0
        %v1441 = vpop.f32.mrb[0].mxu0
        %v1442 = vpop.f32.mrb[0].mxu0
        %1443 = vdwg.mxu0
        %v1444 = vcombine.low %v1301, %v1393
        %v1445 = vcombine.high %v1301, %v1393
        %v1447 = vunpack.c.l.s4 1983009808
        %v1448 = vunpack.c.0.s8 %v1447
        %v1449 = vlaneseq
        %v1450 = vshrl.u32 %v1449, 7
        %v1451 = vsub.s32 %v1448, %v1450
        %v1452 = vrot.slane %v1444, %v1451
        %v1454 = vunpack.c.l.s4 1983009808
        %v1455 = vunpack.c.0.s8 %v1454
        %v1456 = vlaneseq
        %v1457 = vshrl.u32 %v1456, 7
        %v1458 = vsub.s32 %v1455, %v1457
        %v1459 = vrot.slane %v1445, %v1458
        %v1460 = vcombine.low %v1347, %v1439
        %v1461 = vcombine.high %v1347, %v1439
        %v1463 = vunpack.c.l.s4 1983009808
        %v1464 = vunpack.c.0.s8 %v1463
        %v1465 = vlaneseq
        %v1466 = vshrl.u32 %v1465, 7
        %v1467 = vsub.s32 %v1464, %v1466
        %v1468 = vrot.slane %v1460, %v1467
        %v1470 = vunpack.c.l.s4 1983009808
        %v1471 = vunpack.c.0.s8 %v1470
        %v1472 = vlaneseq
        %v1473 = vshrl.u32 %v1472, 7
        %v1474 = vsub.s32 %v1471, %v1473
        %v1475 = vrot.slane %v1461, %v1474
        %v1476 = vcombine.low %v1452, %v1468
        %v1477 = vcombine.high %v1452, %v1468
        %v1479 = vunpack.c.l.s4 1934713408
        %v1480 = vunpack.c.0.s8 %v1479
        %v1481 = vlaneseq
        %v1482 = vshrl.u32 %v1481, 7
        %v1483 = vsub.s32 %v1480, %v1482
        %v1484 = vrot.slane %v1476, %v1483
        %v1486 = vunpack.c.l.s4 1934713408
        %v1487 = vunpack.c.0.s8 %v1486
        %v1488 = vlaneseq
        %v1489 = vshrl.u32 %v1488, 7
        %v1490 = vsub.s32 %v1487, %v1489
        %v1491 = vrot.slane %v1477, %v1490
        %v1492 = vcombine.low %v1459, %v1475
        %v1493 = vcombine.high %v1459, %v1475
        %v1495 = vunpack.c.l.s4 1934713408
        %v1496 = vunpack.c.0.s8 %v1495
        %v1497 = vlaneseq
        %v1498 = vshrl.u32 %v1497, 7
        %v1499 = vsub.s32 %v1496, %v1498
        %v1500 = vrot.slane %v1492, %v1499
        %v1502 = vunpack.c.l.s4 1934713408
        %v1503 = vunpack.c.0.s8 %v1502
        %v1504 = vlaneseq
        %v1505 = vshrl.u32 %v1504, 7
        %v1506 = vsub.s32 %v1503, %v1505
        %v1507 = vrot.slane %v1493, %v1506
        %v1508 = vcombine.high %v1484, 0.0
        %v1509 = vcombine.high %v1491, 0.0
        %v1510 = vcombine.high %v1500, 0.0
        %v1511 = vcombine.high %v1507, 0.0
        %v1512 = vcombine.low %v1484, %v1491
        %v1514 = vunpack.c.l.s4 1983009808
        %v1515 = vunpack.c.0.s8 %v1514
        %v1516 = vlaneseq
        %v1517 = vshrl.u32 %v1516, 7
        %v1518 = vsub.s32 %v1515, %v1517
        %v1519 = vrot.slane %v1512, %v1518
        %v1520 = vcombine.low %v1508, %v1509
        %v1522 = vunpack.c.l.s4 1983009808
        %v1523 = vunpack.c.0.s8 %v1522
        %v1524 = vlaneseq
        %v1525 = vshrl.u32 %v1524, 7
        %v1526 = vsub.s32 %v1523, %v1525
        %v1527 = vrot.slane %v1520, %v1526
        %v1528 = vcombine.low %v1500, %v1507
        %v1530 = vunpack.c.l.s4 1983009808
        %v1531 = vunpack.c.0.s8 %v1530
        %v1532 = vlaneseq
        %v1533 = vshrl.u32 %v1532, 7
        %v1534 = vsub.s32 %v1531, %v1533
        %v1535 = vrot.slane %v1528, %v1534
        %v1536 = vcombine.low %v1510, %v1511
        %v1538 = vunpack.c.l.s4 1983009808
        %v1539 = vunpack.c.0.s8 %v1538
        %v1540 = vlaneseq
        %v1541 = vshrl.u32 %v1540, 7
        %v1542 = vsub.s32 %v1539, %v1541
        %v1543 = vrot.slane %v1536, %v1542
        %v1544 = vcombine.low %v1519, %v1527
        %v1545 = vcombine.high %v1519, %v1527
        %v1547 = vunpack.c.l.s4 1934713408
        %v1548 = vunpack.c.0.s8 %v1547
        %v1549 = vlaneseq
        %v1550 = vshrl.u32 %v1549, 7
        %v1551 = vsub.s32 %v1548, %v1550
        %v1552 = vrot.slane %v1544, %v1551
        %v1554 = vunpack.c.l.s4 1934713408
        %v1555 = vunpack.c.0.s8 %v1554
        %v1556 = vlaneseq
        %v1557 = vshrl.u32 %v1556, 7
        %v1558 = vsub.s32 %v1555, %v1557
        %v1559 = vrot.slane %v1545, %v1558
        %v1560 = vcombine.low %v1535, %v1543
        %v1561 = vcombine.high %v1535, %v1543
        %v1563 = vunpack.c.l.s4 1934713408
        %v1564 = vunpack.c.0.s8 %v1563
        %v1565 = vlaneseq
        %v1566 = vshrl.u32 %v1565, 7
        %v1567 = vsub.s32 %v1564, %v1566
        %v1568 = vrot.slane %v1560, %v1567
        %v1570 = vunpack.c.l.s4 1934713408
        %v1571 = vunpack.c.0.s8 %v1570
        %v1572 = vlaneseq
        %v1573 = vshrl.u32 %v1572, 7
        %v1574 = vsub.s32 %v1571, %v1573
        %v1575 = vrot.slane %v1561, %v1574
        %v1576 = vcombine.low %v1552, %v1568
        %v1577 = vcombine.high %v1552, %v1568
        %v1578 = vcombine.low %v1559, %v1575
        %v1579 = vcombine.high %v1559, %v1575
        %1581 = vrot.lane.b32.xlu0 %v1577, 8
        %v1582 = vpop.permute.xlu0 %1581
        %1585 = vrot.lane.b32.xlu0 %v1578, 16
        %v1586 = vpop.permute.xlu0 %1585
        %1589 = vrot.lane.b32.xlu0 %v1579, 24
        %v1590 = vpop.permute.xlu0 %1589
        %v1592 = vsel %vm1012, %v1576, %v1582
        %vm1593 = vcmask 130048
        %v1594 = vsel %vm1593, %v1592, %v1586
        %vm1595 = vcmask 195584
        %v1596 = vsel %vm1595, %v1594, %v1590
        %v1597 = vpack.c.bf16 %v1596, %v1596
        %v1598 = vld [vmem:[%s2] sm:$0xf]
        %v1599 = vld [vmem:[%s2 + $0x4] sm:$0xf]
        %v1600 = vld [vmem:[%s2 + $0x8] sm:$0xf]
        %v1601 = vld [vmem:[%s2 + $0xc] sm:$0xf]
        %v1606 = vunpack.c.l.b16 %v1598
        %v1607 = vunpack.c.l.b16 %v1599
        %v1608 = vunpack.c.l.b16 %v1600
        %v1609 = vunpack.c.l.b16 %v1601
        %v1610 = vpack.c.b16 %v1607, %v1606
        %v1611 = vpack.c.b16 %v1609, %v1608
        %v1615 = vsel %vm468, %v1597, 0
        %1617 = vmatprep.subr.bf16.mxu0 0
        %1618 = vmatpush1.bf16.msra.mxu0 %v1610
        %1619 = vmatprep.subr.bf16.mxu0 0
        %1620 = vmatpush1.bf16.msra.mxu0 %v1611
        %1621 = vmatprep.subr.bf16.mxu0 0
        %1622 = vmatpush1.bf16.msra.mxu0 0
        %1623 = vmatprep.subr.bf16.mxu0 0
        %1624 = vmatpush1.bf16.msra.mxu0 0
        %1625 = vmatprep.subr.bf16.mxu0 0
        %1626 = vmatpush1.bf16.msra.mxu0 0
        %1627 = vmatprep.subr.bf16.mxu0 0
        %1628 = vmatpush1.bf16.msra.mxu0 0
        %1629 = vmatprep.subr.bf16.mxu0 0
        %1630 = vmatpush1.bf16.msra.mxu0 0
        %1631 = vmatprep.subr.bf16.mxu0 0
        %1632 = vmatpush1.bf16.msra.mxu0 0
        %1633 = vmatprep.subr.bf16.mxu0 0
        %1634 = vmatpush1.bf16.msra.mxu0 0
        %1635 = vmatprep.subr.bf16.mxu0 0
        %1636 = vmatpush1.bf16.msra.mxu0 0
        %1637 = vmatprep.subr.bf16.mxu0 0
        %1638 = vmatpush1.bf16.msra.mxu0 0
        %1639 = vmatprep.subr.bf16.mxu0 0
        %1640 = vmatpush1.bf16.msra.mxu0 0
        %1641 = vmatprep.subr.bf16.mxu0 0
        %1642 = vmatpush1.bf16.msra.mxu0 0
        %1643 = vmatprep.subr.bf16.mxu0 0
        %1644 = vmatpush1.bf16.msra.mxu0 0
        %1645 = vmatprep.subr.bf16.mxu0 0
        %1646 = vmatpush1.bf16.msra.mxu0 0
        %1647 = vmatprep.subr.bf16.mxu0 0
        %1648 = vmatpush1.bf16.msra.mxu0 0
        %1649 = vmatprep.mubr.bf16.mxu0 0
        %1650 = vmatmul.mubr.bf16.gmra.mrb[0].mxu0 %v1615
        %v1651 = vpop.f32.mrb[0].mxu0
        %v1652 = vadd.f32 0.0, %v1651
        %v1653 = vpop.f32.mrb[0].mxu0
        %v1654 = vpop.f32.mrb[0].mxu0
        %v1655 = vpop.f32.mrb[0].mxu0
        %1656 = vdwg.mxu0
        %v1657 = vadd.f32 %v465, %v1652
        %v1658 = vld [vmem:[%s3] sm:$0x1]
        %v1660 = vlaneseq
        %v1661 = vshrl.u32 %v1660, 7
        %v1662 = vsub.s32 0, %v1661
        %v1663 = vrot.slane %v1658, %v1662
        %v1665 = vadd.f32 %v1657, %v1663
        %v1666 = vld [vmem:[%s6] sm:$0x1]
        %v1667 = vld [vmem:[%s7] sm:$0x1]
        %v1668 = vsel %vm468, %v1665, 0.0
        %1669 = vadd.xlane.f32.xlu0 %v1668
        %v1670 = vpop.xlane.xlu0 %1669
        %v1671 = vmul.f32 %v1670, %v472
        %v1672 = vsub.f32 %v1665, %v1671
        %v1673 = vmul.f32 %v1672, %v1672
        %v1674 = vsel %vm468, %v1673, 0.0
        %1675 = vadd.xlane.f32.xlu0 %v1674
        %v1676 = vpop.xlane.xlu0 %1675
        %v1677 = vmul.f32 %v1676, %v472
        %v1678 = vadd.f32 %v1677, 1e-05
        %v1679 = vrsqrt.pop %v1678
        %v1680 = vmul.f32 %v1672, %v1679
        %v1682 = vlaneseq
        %v1683 = vshrl.u32 %v1682, 7
        %v1684 = vsub.s32 0, %v1683
        %v1685 = vrot.slane %v1666, %v1684
        %v1687 = vmul.f32 %v1680, %v1685
        %v1689 = vlaneseq
        %v1690 = vshrl.u32 %v1689, 7
        %v1691 = vsub.s32 0, %v1690
        %v1692 = vrot.slane %v1667, %v1691
        %v1694 = vadd.f32 %v1687, %v1692
        %v1695 = vpack.c.bf16 %v1694, %v1694
        %v1696 = vld [vmem:[%s8] sm:$0xf]
        %v1697 = vld [vmem:[%s8 + $0x4] sm:$0xf]
        %v1698 = vld [vmem:[%s8 + $0x8] sm:$0xf]
        %v1699 = vld [vmem:[%s8 + $0xc] sm:$0xf]
        %v1700 = vld [vmem:[%s9] sm:$0x1]
        %v1702 = vlaneseq
        %v1703 = vshrl.u32 %v1702, 7
        %v1704 = vsub.s32 0, %v1703
        %v1705 = vrot.slane %v1700, %v1704
        %v1711 = vunpack.c.l.b16 %v1696
        %v1712 = vunpack.c.l.b16 %v1697
        %v1713 = vunpack.c.l.b16 %v1698
        %v1714 = vunpack.c.l.b16 %v1699
        %v1715 = vpack.c.b16 %v1712, %v1711
        %v1716 = vpack.c.b16 %v1714, %v1713
        %v1720 = vsel %vm468, %v1695, 0
        %1722 = vmatprep.subr.bf16.mxu0 0
        %1723 = vmatpush1.bf16.msra.mxu0 %v1715
        %1724 = vmatprep.subr.bf16.mxu0 0
        %1725 = vmatpush1.bf16.msra.mxu0 %v1716
        %1726 = vmatprep.subr.bf16.mxu0 0
        %1727 = vmatpush1.bf16.msra.mxu0 0
        %1728 = vmatprep.subr.bf16.mxu0 0
        %1729 = vmatpush1.bf16.msra.mxu0 0
        %1730 = vmatprep.subr.bf16.mxu0 0
        %1731 = vmatpush1.bf16.msra.mxu0 0
        %1732 = vmatprep.subr.bf16.mxu0 0
        %1733 = vmatpush1.bf16.msra.mxu0 0
        %1734 = vmatprep.subr.bf16.mxu0 0
        %1735 = vmatpush1.bf16.msra.mxu0 0
        %1736 = vmatprep.subr.bf16.mxu0 0
        %1737 = vmatpush1.bf16.msra.mxu0 0
        %1738 = vmatprep.subr.bf16.mxu0 0
        %1739 = vmatpush1.bf16.msra.mxu0 0
        %1740 = vmatprep.subr.bf16.mxu0 0
        %1741 = vmatpush1.bf16.msra.mxu0 0
        %1742 = vmatprep.subr.bf16.mxu0 0
        %1743 = vmatpush1.bf16.msra.mxu0 0
        %1744 = vmatprep.subr.bf16.mxu0 0
        %1745 = vmatpush1.bf16.msra.mxu0 0
        %1746 = vmatprep.subr.bf16.mxu0 0
        %1747 = vmatpush1.bf16.msra.mxu0 0
        %1748 = vmatprep.subr.bf16.mxu0 0
        %1749 = vmatpush1.bf16.msra.mxu0 0
        %1750 = vmatprep.subr.bf16.mxu0 0
        %1751 = vmatpush1.bf16.msra.mxu0 0
        %1752 = vmatprep.subr.bf16.mxu0 0
        %1753 = vmatpush1.bf16.msra.mxu0 0
        %1754 = vmatprep.mubr.bf16.mxu0 0
        %1755 = vmatmul.mubr.bf16.gmra.mrb[0].mxu0 %v1720
        %v1756 = vpop.f32.mrb[0].mxu0
        %v1757 = vadd.f32 %v1705, %v1756
        %v1758 = vpop.f32.mrb[0].mxu0
        %v1759 = vpop.f32.mrb[0].mxu0
        %v1760 = vpop.f32.mrb[0].mxu0
        %1761 = vdwg.mxu0
        %v1762 = vmax.f32 %v1757, 0.0
        %v1763 = vpack.c.bf16 %v1762, %v1762
        %v1764 = vld [vmem:[%s10] sm:$0xf]
        %v1765 = vld [vmem:[%s10 + $0x4] sm:$0xf]
        %v1766 = vld [vmem:[%s10 + $0x8] sm:$0xf]
        %v1767 = vld [vmem:[%s10 + $0xc] sm:$0xf]
        %v1768 = vld [vmem:[%s10 + $0x10] sm:$0xf]
        %v1769 = vld [vmem:[%s10 + $0x14] sm:$0xf]
        %v1770 = vld [vmem:[%s10 + $0x18] sm:$0xf]
        %v1771 = vld [vmem:[%s10 + $0x1c] sm:$0xf]
        %v1772 = vld [vmem:[%s10 + $0x20] sm:$0xf]
        %v1773 = vld [vmem:[%s10 + $0x24] sm:$0xf]
        %v1774 = vld [vmem:[%s10 + $0x28] sm:$0xf]
        %v1775 = vld [vmem:[%s10 + $0x2c] sm:$0xf]
        %v1776 = vld [vmem:[%s10 + $0x30] sm:$0xf]
        %v1777 = vld [vmem:[%s10 + $0x34] sm:$0xf]
        %v1778 = vld [vmem:[%s10 + $0x38] sm:$0xf]
        %v1779 = vld [vmem:[%s10 + $0x3c] sm:$0xf]
        %v1780 = vld [vmem:[%s11] sm:$0x1]
        %v1782 = vlaneseq
        %v1783 = vshrl.u32 %v1782, 7
        %v1784 = vsub.s32 0, %v1783
        %v1785 = vrot.slane %v1780, %v1784
        %v1803 = vunpack.c.l.b16 %v1764
        %v1804 = vunpack.c.l.b16 %v1765
        %v1805 = vunpack.c.l.b16 %v1766
        %v1806 = vunpack.c.l.b16 %v1767
        %v1807 = vunpack.c.l.b16 %v1768
        %v1808 = vunpack.c.l.b16 %v1769
        %v1809 = vunpack.c.l.b16 %v1770
        %v1810 = vunpack.c.l.b16 %v1771
        %v1811 = vunpack.c.l.b16 %v1772
        %v1812 = vunpack.c.l.b16 %v1773
        %v1813 = vunpack.c.l.b16 %v1774
        %v1814 = vunpack.c.l.b16 %v1775
        %v1815 = vunpack.c.l.b16 %v1776
        %v1816 = vunpack.c.l.b16 %v1777
        %v1817 = vunpack.c.l.b16 %v1778
        %v1818 = vunpack.c.l.b16 %v1779
        %v1819 = vpack.c.b16 %v1804, %v1803
        %v1820 = vpack.c.b16 %v1806, %v1805
        %v1821 = vpack.c.b16 %v1808, %v1807
        %v1822 = vpack.c.b16 %v1810, %v1809
        %v1823 = vpack.c.b16 %v1812, %v1811
        %v1824 = vpack.c.b16 %v1814, %v1813
        %v1825 = vpack.c.b16 %v1816, %v1815
        %v1826 = vpack.c.b16 %v1818, %v1817
        %1835 = vmatprep.subr.bf16.mxu0 0
        %1836 = vmatpush1.bf16.msra.mxu0 %v1819
        %1837 = vmatprep.subr.bf16.mxu0 0
        %1838 = vmatpush1.bf16.msra.mxu0 %v1820
        %1839 = vmatprep.subr.bf16.mxu0 0
        %1840 = vmatpush1.bf16.msra.mxu0 %v1821
        %1841 = vmatprep.subr.bf16.mxu0 0
        %1842 = vmatpush1.bf16.msra.mxu0 %v1822
        %1843 = vmatprep.subr.bf16.mxu0 0
        %1844 = vmatpush1.bf16.msra.mxu0 %v1823
        %1845 = vmatprep.subr.bf16.mxu0 0
        %1846 = vmatpush1.bf16.msra.mxu0 %v1824
        %1847 = vmatprep.subr.bf16.mxu0 0
        %1848 = vmatpush1.bf16.msra.mxu0 %v1825
        %1849 = vmatprep.subr.bf16.mxu0 0
        %1850 = vmatpush1.bf16.msra.mxu0 %v1826
        %1851 = vmatprep.subr.bf16.mxu0 0
        %1852 = vmatpush1.bf16.msra.mxu0 0
        %1853 = vmatprep.subr.bf16.mxu0 0
        %1854 = vmatpush1.bf16.msra.mxu0 0
        %1855 = vmatprep.subr.bf16.mxu0 0
        %1856 = vmatpush1.bf16.msra.mxu0 0
        %1857 = vmatprep.subr.bf16.mxu0 0
        %1858 = vmatpush1.bf16.msra.mxu0 0
        %1859 = vmatprep.subr.bf16.mxu0 0
        %1860 = vmatpush1.bf16.msra.mxu0 0
        %1861 = vmatprep.subr.bf16.mxu0 0
        %1862 = vmatpush1.bf16.msra.mxu0 0
        %1863 = vmatprep.subr.bf16.mxu0 0
        %1864 = vmatpush1.bf16.msra.mxu0 0
        %1865 = vmatprep.subr.bf16.mxu0 0
        %1866 = vmatpush1.bf16.msra.mxu0 0
        %1867 = vmatprep.mubr.bf16.mxu0 0
        %1868 = vmatmul.mubr.bf16.gmra.mrb[0].mxu0 %v1763
        %v1869 = vpop.f32.mrb[0].mxu0
        %v1870 = vadd.f32 %v1785, %v1869
        %v1871 = vpop.f32.mrb[0].mxu0
        %v1872 = vpop.f32.mrb[0].mxu0
        %v1873 = vpop.f32.mrb[0].mxu0
        %1874 = vdwg.mxu0
        %v1875 = vadd.f32 %v1665, %v1870
        %v1876 = vpack.c.bf16 %v1875, %v1875
        %vm1877 = vcmask 257024
        %1878 = vst.msk [vmem:[%s458] sm:$0xf] %vm1877, %v1876
        %s1879 = sand.u32 %s335, 1
        %s1880 = scalar_lea.sflag [#allocation3], %s1879
        %s1881 = sand.u32 %s335, 1
        %s1882 = smul.addr %s1881, 4
        %s1883 = scalar_lea.vmem [#allocation2], %s1882
        // Predicated region
        $region77: #{tpu_custom_call.1} parent=75 // pred_check
          %p1884 = pneg %p345
        $region78: #{tpu_custom_call.1} parent=75 // pred_check_branch
          %1886 = sbr.rel (%p1884) target = $region80
        $region79: #{tpu_custom_call.1} parent=75 // pred_region
          %s1888 = ssub.s32 64, 64
          %1889 = vsyncadd %s1880, %s1888
          %s1890 = smul.addr %s28, 64
          %s1891 = scalar_lea.hbm %s14, %s1890
          %s1893 = sshll.u32 %s1883, 4
          %s1894 = int_to_ptr.vmem [resolvable:$true] %s1893
          %1896 = dma.vmem_to_hbm [thread:$0]  %s1894, 64, %s1891, %s1880
        $region80: #{tpu_custom_call.1} parent=75 // pred_fallthru
          _
      $region76: #{tpu_custom_call.1} parent=5 // pred_fallthru
        _
      %p1897 = scmp.le.s32.totalorder 2, %s23
      // Predicated region
      $region81: #{tpu_custom_call.1} parent=5 // pred_check
        %p1898 = pneg %p1897
      $region82: #{tpu_custom_call.1} parent=5 // pred_check_branch
        %1900 = sbr.rel (%p1898) target = $region84
      $region83: #{tpu_custom_call.1} parent=5 // pred_region
        %s1901 = ssub.s32 %s23, 2
        // Predicated region
        $region85: #{tpu_custom_call.1} parent=83 // pred_check
          %p1902 = pneg %p351
        $region86: #{tpu_custom_call.1} parent=83 // pred_check_branch
          %1904 = sbr.rel (%p1902) target = $region88
        $region87: #{tpu_custom_call.1} parent=83 // pred_region
          %s1905 = sand.u32 %s336, 1
          %s1906 = scalar_lea.sflag [#allocation3], %s1905
          %s1907 = sand.u32 %s336, 1
          %s1908 = smul.addr %s1907, 4
          %s1909 = scalar_lea.vmem [#allocation2], %s1908
          %1910 = dma.done %s1906, 64
        $region88: #{tpu_custom_call.1} parent=83 // pred_fallthru
          _
      $region84: #{tpu_custom_call.1} parent=5 // pred_fallthru
        _
    $region6: #{tpu_custom_call.1} parent=1 // loop_footer
      %s27 = sadd.s32 1, %s23
    $region7: #{tpu_custom_call.1} parent=1 // loop_footer_branch
      %22 = sbr.rel target = $region3
    $region8: #{tpu_custom_call.1} parent=1 // loop_exit
      _
    %1911 = vsyncpa [#allocation3], 1
    %s1912 = scalar_lea.sflag [#allocation3], 1
    %1913 = vsyncpa %s1912, 1

</llo_original>
